<compile_context>
chip_gen: v7x
topology: tpu7x:2x2x1
jax: 0.10.0
libtpu: 0.0.40
codegen_flags: <defaults>
</compile_context>

<pallas_src>
import math

import numpy as np
import jax
import jax.numpy as jnp
from jax.experimental import pallas as pl
from jax.experimental.pallas import tpu as pltpu


def _global_filter_kernel(x_ref, mr_ref, mi_ref, nr_ref, ni_ref,
                          wr_ref, wi_ref, o_ref):
    # Constants / learned filter: loaded once per grid step; their blocks only
    # change when the channel-tile index changes (outer grid axis).
    mr = mr_ref[...]                      # (K2, M)  bf16  forward DFT (real)
    mi = mi_ref[...]                      # (K2, M)  bf16  forward DFT (imag)
    nr = nr_ref[...]                      # (M, K2)  bf16  inverse DFT (real)
    ni = ni_ref[...]                      # (M, K2)  bf16  inverse DFT (imag)
    wr = wr_ref[...]                      # (K2, Ct) f32   learned filter (real)
    wi = wi_ref[...]                      # (K2, Ct) f32   learned filter (imag)

    # TB images per grid step, statically unrolled.
    for t in range(x_ref.shape[0]):
        x2 = x_ref[t].astype(jnp.bfloat16)                         # (M, Ct)
        # forward 2-D real DFT (unnormalized)
        vr = jnp.dot(mr, x2, preferred_element_type=jnp.float32)   # (K2, Ct)
        vi = jnp.dot(mi, x2, preferred_element_type=jnp.float32)
        # learned complex filter, f32 on the VPU
        yr = (vr * wr - vi * wi).astype(jnp.bfloat16)
        yi = (vr * wi + vi * wr).astype(jnp.bfloat16)
        # inverse 2-D DFT (Hermitian fold + 1/(a*b) folded into Nr/Ni)
        y = (jnp.dot(nr, yr, preferred_element_type=jnp.float32)
             + jnp.dot(ni, yi, preferred_element_type=jnp.float32))
        o_ref[t] = y.astype(o_ref.dtype)


def global_filter(x, w_real, w_imag, spatial_size=None):
    """x: (B, N, C); w_real / w_imag: (a, b//2+1, C) filter real / imag parts."""
    B, N, C = x.shape
    if spatial_size is None:
        a = b = int(math.sqrt(N))
    else:
        a, b = spatial_size
    wf = b // 2 + 1
    assert a * b == N
    assert w_real.shape == (a, wf, C) and w_imag.shape == (a, wf, C)

    M = a * b          # flattened spatial size (= N)
    K2 = a * wf        # flattened rfft2 spectral size

    # ---- trace-time numpy DFT constants (exact real DFT matrices) ----------
    n1 = np.arange(a)
    n2 = np.arange(b)
    k1 = np.arange(a)
    k2 = np.arange(wf)
    # phase(k1, k2, n1, n2) = 2*pi*(k1*n1/a + k2*n2/b)
    phi = 2.0 * np.pi * (
        (k1[:, None, None, None] * n1[None, None, :, None]) / a
        + (k2[None, :, None, None] * n2[None, None, None, :]) / b
    )                                                   # (a, wf, a, b)
    cos_phi = np.cos(phi)
    sin_phi = np.sin(phi)

    # forward (unnormalized) rfft2:  v = (Mr + i*Mi) @ x2d
    Mr = cos_phi.reshape(K2, M)
    Mi = (-sin_phi).reshape(K2, M)

    # inverse: Hermitian fold along k2 (2x, DC/Nyquist once) + 1/(a*b) (ortho
    # fwd * ortho inv) pre-folded; y2d = Nr @ yr + Ni @ yi
    mult = np.full((wf,), 2.0)
    mult[0] = 1.0
    if b % 2 == 0:
        mult[b // 2] = 1.0
    scale = (mult / float(a * b))[None, :, None, None]
    Nr = (cos_phi * scale).reshape(K2, M).T.copy()      # (M, K2)
    Ni = (-sin_phi * scale).reshape(K2, M).T.copy()     # (M, K2)

    mr = jnp.asarray(Mr, dtype=jnp.bfloat16)
    mi = jnp.asarray(Mi, dtype=jnp.bfloat16)
    nr = jnp.asarray(Nr, dtype=jnp.bfloat16)
    ni = jnp.asarray(Ni, dtype=jnp.bfloat16)

    # learned filter, flattened to the kernel's (k1*wf + k2, C) spectral layout
    wr2 = jnp.asarray(w_real, dtype=jnp.float32).reshape(K2, C)
    wi2 = jnp.asarray(w_imag, dtype=jnp.float32).reshape(K2, C)

    # ---- tiling -------------------------------------------------------------
    # channel tile: lane-dense multiple of 128 when possible, else full C
    if C % 128 == 0 and C > 256:
        c_tile = 256 if C % 256 == 0 else 128
    else:
        c_tile = C
    # images per grid step
    for TB in (8, 4, 2, 1):
        if B % TB == 0:
            break
    num_c = C // c_tile
    num_b = B // TB

    # explicit VMEM budget (double-buffered blocks + resident constants + live
    # spectral intermediates), with headroom; clamped below v7x physical VMEM.
    x_bytes = jnp.dtype(x.dtype).itemsize
    est = (2 * TB * N * c_tile * (x_bytes + 4)        # x + f32 out blocks
           + 2 * 2 * K2 * M * 2 + 2 * 2 * M * K2 * 2  # Mr/Mi, Nr/Ni (bf16)
           + 2 * 2 * K2 * c_tile * 4                  # Wr/Wi blocks (f32)
           + 8 * K2 * c_tile * 4 + 2 * M * c_tile * 4)  # live intermediates
    vmem_limit = int(min(56 * 2 ** 20, max(2 * est, 16 * 2 ** 20)))

    out = pl.pallas_call(
        _global_filter_kernel,
        out_shape=jax.ShapeDtypeStruct((B, N, C), jnp.float32),
        grid=(num_c, num_b),                               # C outermost, B inner
        in_specs=[
            pl.BlockSpec((TB, N, c_tile), lambda ci, bi: (bi, 0, ci)),  # x
            pl.BlockSpec((K2, M), lambda ci, bi: (0, 0)),               # Mr
            pl.BlockSpec((K2, M), lambda ci, bi: (0, 0)),               # Mi
            pl.BlockSpec((M, K2), lambda ci, bi: (0, 0)),               # Nr
            pl.BlockSpec((M, K2), lambda ci, bi: (0, 0)),               # Ni
            pl.BlockSpec((K2, c_tile), lambda ci, bi: (0, ci)),         # Wr
            pl.BlockSpec((K2, c_tile), lambda ci, bi: (0, ci)),         # Wi
        ],
        out_specs=pl.BlockSpec((TB, N, c_tile), lambda ci, bi: (bi, 0, ci)),
        compiler_params=pltpu.CompilerParams(
            dimension_semantics=("parallel", "parallel"),
            vmem_limit_bytes=vmem_limit),
    )(x, mr, mi, nr, ni, wr2, wi2)

    return out


if __name__ == "__main__":
    # Small shapes consistent with the module: tokens N = a*b with a = b = 16.
    B, a, b, C = 2, 16, 16, 32
    N = a * b
    wf = b // 2 + 1

    key = jax.random.PRNGKey(0)
    kx, kw = jax.random.split(key)
    x = jax.random.normal(kx, (B, N, C), dtype=jnp.float32)
    # nn.Parameter(torch.randn(h, w, dim, 2) * 0.02), h = a, w = b//2+1, dim = C
    complex_weight = 0.02 * jax.random.normal(kw, (a, wf, C, 2), dtype=jnp.float32)
    w_real = complex_weight[..., 0]
    w_imag = complex_weight[..., 1]

    out = jax.block_until_ready(global_filter(x, w_real, w_imag))

    # numpy reference reproducing the PyTorch fft semantics exactly
    xn = np.asarray(x, dtype=np.float64).reshape(B, a, b, C)
    wc = np.asarray(w_real, dtype=np.float64) + 1j * np.asarray(w_imag, dtype=np.float64)
    xf = np.fft.rfft2(xn, axes=(1, 2), norm="ortho")
    yf = xf * wc[None]
    ref = np.fft.irfft2(yf, s=(a, b), axes=(1, 2), norm="ortho").reshape(B, N, C)

    outn = np.asarray(out, dtype=np.float64)
    err = np.max(np.abs(outn - ref))
    # bf16 MXU inputs (per perf review) -> slightly looser atol than pure f32.
    if not np.allclose(outn, ref, atol=3e-3, rtol=2e-2):
        raise AssertionError(f"mismatch vs reference, max abs err = {err}")
    print("KERNEL_OK")
</pallas_src>

<mosaic_0001>
module attributes {stable_mosaic.version = 11 : i64} {
  func.func @_global_filter_kernel(%arg0: i32, %arg1: i32, %arg2: memref<2x256x32xf32, #tpu.memory_space<vmem>>, %arg3: memref<144x256xbf16, #tpu.memory_space<vmem>>, %arg4: memref<144x256xbf16, #tpu.memory_space<vmem>>, %arg5: memref<256x144xbf16, #tpu.memory_space<vmem>>, %arg6: memref<256x144xbf16, #tpu.memory_space<vmem>>, %arg7: memref<144x32xf32, #tpu.memory_space<vmem>>, %arg8: memref<144x32xf32, #tpu.memory_space<vmem>>, %arg9: memref<2x256x32xf32, #tpu.memory_space<vmem>>) attributes {dimension_semantics = [#tpu.dimension_semantics<parallel>, #tpu.dimension_semantics<parallel>], iteration_bounds = array<i64: 1, 1>, scalar_prefetch = 0 : i64, scratch_operands = 0 : i64, tpu.core_type = #tpu.core_type<tc>, window_params = [{transform_indices = @transform_0, window_bounds = array<i64: 2, 256, 32>}, {pipeline_mode = #tpu.pipeline_mode<synchronous>, transform_indices = @transform_1, window_bounds = array<i64: 144, 256>}, {pipeline_mode = #tpu.pipeline_mode<synchronous>, transform_indices = @transform_2, window_bounds = array<i64: 144, 256>}, {pipeline_mode = #tpu.pipeline_mode<synchronous>, transform_indices = @transform_3, window_bounds = array<i64: 256, 144>}, {pipeline_mode = #tpu.pipeline_mode<synchronous>, transform_indices = @transform_4, window_bounds = array<i64: 256, 144>}, {transform_indices = @transform_5, window_bounds = array<i64: 144, 32>}, {transform_indices = @transform_6, window_bounds = array<i64: 144, 32>}, {transform_indices = @transform_7, window_bounds = array<i64: 2, 256, 32>}]} {
    %c0 = arith.constant 0 : index
    %c0_0 = arith.constant 0 : index
    %0 = vector.load %arg3[%c0, %c0_0] : memref<144x256xbf16, #tpu.memory_space<vmem>>, vector<144x256xbf16>
    %c0_1 = arith.constant 0 : index
    %c0_2 = arith.constant 0 : index
    %1 = vector.load %arg4[%c0_1, %c0_2] : memref<144x256xbf16, #tpu.memory_space<vmem>>, vector<144x256xbf16>
    %c0_3 = arith.constant 0 : index
    %c0_4 = arith.constant 0 : index
    %2 = vector.load %arg5[%c0_3, %c0_4] : memref<256x144xbf16, #tpu.memory_space<vmem>>, vector<256x144xbf16>
    %c0_5 = arith.constant 0 : index
    %c0_6 = arith.constant 0 : index
    %3 = vector.load %arg6[%c0_5, %c0_6] : memref<256x144xbf16, #tpu.memory_space<vmem>>, vector<256x144xbf16>
    %c0_7 = arith.constant 0 : index
    %c0_8 = arith.constant 0 : index
    %4 = vector.load %arg7[%c0_7, %c0_8] : memref<144x32xf32, #tpu.memory_space<vmem>>, vector<144x32xf32>
    %c0_9 = arith.constant 0 : index
    %c0_10 = arith.constant 0 : index
    %5 = vector.load %arg8[%c0_9, %c0_10] : memref<144x32xf32, #tpu.memory_space<vmem>>, vector<144x32xf32>
    %c0_11 = arith.constant 0 : index
    %c0_12 = arith.constant 0 : index
    %c0_13 = arith.constant 0 : index
    %6 = vector.load %arg2[%c0_11, %c0_12, %c0_13] : memref<2x256x32xf32, #tpu.memory_space<vmem>>, vector<1x256x32xf32>
    %7 = vector.shape_cast %6 : vector<1x256x32xf32> to vector<256x32xf32>
    %8 = arith.truncf %7 : vector<256x32xf32> to vector<256x32xbf16>
    %cst = arith.constant dense<0.000000e+00> : vector<144x32xf32>
    %9 = tpu.matmul %0, %8, %cst {dimension_numbers = #tpu.dot_dimension_numbers<[1], [0], [0], [1], [0, 0, 1, 1], [], []>} : vector<144x256xbf16>, vector<256x32xbf16>, vector<144x32xf32> -> vector<144x32xf32>
    %cst_14 = arith.constant dense<0.000000e+00> : vector<144x32xf32>
    %10 = tpu.matmul %1, %8, %cst_14 {dimension_numbers = #tpu.dot_dimension_numbers<[1], [0], [0], [1], [0, 0, 1, 1], [], []>} : vector<144x256xbf16>, vector<256x32xbf16>, vector<144x32xf32> -> vector<144x32xf32>
    %11 = arith.mulf %9, %4 : vector<144x32xf32>
    %12 = arith.mulf %10, %5 : vector<144x32xf32>
    %13 = arith.subf %11, %12 : vector<144x32xf32>
    %14 = arith.truncf %13 : vector<144x32xf32> to vector<144x32xbf16>
    %15 = arith.mulf %9, %5 : vector<144x32xf32>
    %16 = arith.mulf %10, %4 : vector<144x32xf32>
    %17 = arith.addf %15, %16 : vector<144x32xf32>
    %18 = arith.truncf %17 : vector<144x32xf32> to vector<144x32xbf16>
    %cst_15 = arith.constant dense<0.000000e+00> : vector<256x32xf32>
    %19 = tpu.matmul %2, %14, %cst_15 {dimension_numbers = #tpu.dot_dimension_numbers<[1], [0], [0], [1], [0, 0, 1, 1], [], []>} : vector<256x144xbf16>, vector<144x32xbf16>, vector<256x32xf32> -> vector<256x32xf32>
    %cst_16 = arith.constant dense<0.000000e+00> : vector<256x32xf32>
    %20 = tpu.matmul %3, %18, %cst_16 {dimension_numbers = #tpu.dot_dimension_numbers<[1], [0], [0], [1], [0, 0, 1, 1], [], []>} : vector<256x144xbf16>, vector<144x32xbf16>, vector<256x32xf32> -> vector<256x32xf32>
    %21 = arith.addf %19, %20 : vector<256x32xf32>
    %c0_17 = arith.constant 0 : index
    %c0_18 = arith.constant 0 : index
    %c0_19 = arith.constant 0 : index
    %22 = vector.load %arg9[%c0_17, %c0_18, %c0_19] : memref<2x256x32xf32, #tpu.memory_space<vmem>>, vector<1x256x32xf32>
    %23 = vector.shape_cast %22 : vector<1x256x32xf32> to vector<256x32xf32>
    %24 = vector.shape_cast %21 : vector<256x32xf32> to vector<1x256x32xf32>
    tpu.vector_store %arg9[%c0_17, %c0_18, %c0_19], %24 {strides = array<i32>} : memref<2x256x32xf32, #tpu.memory_space<vmem>>, vector<1x256x32xf32>,
    %c1 = arith.constant 1 : index
    %c0_20 = arith.constant 0 : index
    %c0_21 = arith.constant 0 : index
    %25 = vector.load %arg2[%c1, %c0_20, %c0_21] : memref<2x256x32xf32, #tpu.memory_space<vmem>>, vector<1x256x32xf32>
    %26 = vector.shape_cast %25 : vector<1x256x32xf32> to vector<256x32xf32>
    %27 = arith.truncf %26 : vector<256x32xf32> to vector<256x32xbf16>
    %cst_22 = arith.constant dense<0.000000e+00> : vector<144x32xf32>
    %28 = tpu.matmul %0, %27, %cst_22 {dimension_numbers = #tpu.dot_dimension_numbers<[1], [0], [0], [1], [0, 0, 1, 1], [], []>} : vector<144x256xbf16>, vector<256x32xbf16>, vector<144x32xf32> -> vector<144x32xf32>
    %cst_23 = arith.constant dense<0.000000e+00> : vector<144x32xf32>
    %29 = tpu.matmul %1, %27, %cst_23 {dimension_numbers = #tpu.dot_dimension_numbers<[1], [0], [0], [1], [0, 0, 1, 1], [], []>} : vector<144x256xbf16>, vector<256x32xbf16>, vector<144x32xf32> -> vector<144x32xf32>
    %30 = arith.mulf %28, %4 : vector<144x32xf32>
    %31 = arith.mulf %29, %5 : vector<144x32xf32>
    %32 = arith.subf %30, %31 : vector<144x32xf32>
    %33 = arith.truncf %32 : vector<144x32xf32> to vector<144x32xbf16>
    %34 = arith.mulf %28, %5 : vector<144x32xf32>
    %35 = arith.mulf %29, %4 : vector<144x32xf32>
    %36 = arith.addf %34, %35 : vector<144x32xf32>
    %37 = arith.truncf %36 : vector<144x32xf32> to vector<144x32xbf16>
    %cst_24 = arith.constant dense<0.000000e+00> : vector<256x32xf32>
    %38 = tpu.matmul %2, %33, %cst_24 {dimension_numbers = #tpu.dot_dimension_numbers<[1], [0], [0], [1], [0, 0, 1, 1], [], []>} : vector<256x144xbf16>, vector<144x32xbf16>, vector<256x32xf32> -> vector<256x32xf32>
    %cst_25 = arith.constant dense<0.000000e+00> : vector<256x32xf32>
    %39 = tpu.matmul %3, %37, %cst_25 {dimension_numbers = #tpu.dot_dimension_numbers<[1], [0], [0], [1], [0, 0, 1, 1], [], []>} : vector<256x144xbf16>, vector<144x32xbf16>, vector<256x32xf32> -> vector<256x32xf32>
    %40 = arith.addf %38, %39 : vector<256x32xf32>
    %c1_26 = arith.constant 1 : index
    %c0_27 = arith.constant 0 : index
    %c0_28 = arith.constant 0 : index
    %41 = vector.load %arg9[%c1_26, %c0_27, %c0_28] : memref<2x256x32xf32, #tpu.memory_space<vmem>>, vector<1x256x32xf32>
    %42 = vector.shape_cast %41 : vector<1x256x32xf32> to vector<256x32xf32>
    %43 = vector.shape_cast %40 : vector<256x32xf32> to vector<1x256x32xf32>
    tpu.vector_store %arg9[%c1_26, %c0_27, %c0_28], %43 {strides = array<i32>} : memref<2x256x32xf32, #tpu.memory_space<vmem>>, vector<1x256x32xf32>,
    return
  }
  func.func @transform_0(%arg0: i32, %arg1: i32) -> (i32, i32, i32) {
    %c0_i32 = arith.constant 0 : i32
    %c0_i32_0 = arith.constant 0 : i32
    return %arg1, %c0_i32, %arg0 : i32, i32, i32
  }
  func.func @transform_1(%arg0: i32, %arg1: i32) -> (i32, i32) {
    %c0_i32 = arith.constant 0 : i32
    %c0_i32_0 = arith.constant 0 : i32
    %c0_i32_1 = arith.constant 0 : i32
    return %c0_i32, %c0_i32_0 : i32, i32
  }
  func.func @transform_2(%arg0: i32, %arg1: i32) -> (i32, i32) {
    %c0_i32 = arith.constant 0 : i32
    %c0_i32_0 = arith.constant 0 : i32
    %c0_i32_1 = arith.constant 0 : i32
    return %c0_i32, %c0_i32_0 : i32, i32
  }
  func.func @transform_3(%arg0: i32, %arg1: i32) -> (i32, i32) {
    %c0_i32 = arith.constant 0 : i32
    %c0_i32_0 = arith.constant 0 : i32
    %c0_i32_1 = arith.constant 0 : i32
    return %c0_i32, %c0_i32_0 : i32, i32
  }
  func.func @transform_4(%arg0: i32, %arg1: i32) -> (i32, i32) {
    %c0_i32 = arith.constant 0 : i32
    %c0_i32_0 = arith.constant 0 : i32
    %c0_i32_1 = arith.constant 0 : i32
    return %c0_i32, %c0_i32_0 : i32, i32
  }
  func.func @transform_5(%arg0: i32, %arg1: i32) -> (i32, i32) {
    %c0_i32 = arith.constant 0 : i32
    %c0_i32_0 = arith.constant 0 : i32
    return %c0_i32, %arg0 : i32, i32
  }
  func.func @transform_6(%arg0: i32, %arg1: i32) -> (i32, i32) {
    %c0_i32 = arith.constant 0 : i32
    %c0_i32_0 = arith.constant 0 : i32
    return %c0_i32, %arg0 : i32, i32
  }
  func.func @transform_7(%arg0: i32, %arg1: i32) -> (i32, i32, i32) {
    %c0_i32 = arith.constant 0 : i32
    %c0_i32_0 = arith.constant 0 : i32
    return %arg1, %c0_i32, %arg0 : i32, i32, i32
  }
}

</mosaic_0001>

<llo_original>
// kernel: tpu_custom_call.1
$region0: #{tpu_custom_call.1}
  #allocation0 [shape = 'u32[]', space=smem, size = 0x4, offset = 0x4, fixed_abs, tag = 'smem constant byte address 0x4 - core index']
  #allocation1 [shape = 'u32[144,128]{1,0:T(1,128)}', space=vmem, size = 0x12000, scoped, tag = 'internal scratch']
  %s0 = inlined_call_operand.vmem [shape: f32[2,256,32], index: 0, kind: input, shape index: {}]
  %s1 = inlined_call_operand.vmem [shape: bf16[144,256], index: 1, kind: input, shape index: {}]
  %s2 = inlined_call_operand.vmem [shape: bf16[144,256], index: 2, kind: input, shape index: {}]
  %s3 = inlined_call_operand.vmem [shape: bf16[256,144], index: 3, kind: input, shape index: {}]
  %s4 = inlined_call_operand.vmem [shape: bf16[256,144], index: 4, kind: input, shape index: {}]
  %s5 = inlined_call_operand.vmem [shape: f32[144,32], index: 5, kind: input, shape index: {}]
  %s6 = inlined_call_operand.vmem [shape: f32[144,32], index: 6, kind: input, shape index: {}]
  %s7 = inlined_call_operand.vmem [shape: f32[2,256,32], index: 7, kind: output, shape index: {}]
  %s8 = sld [smem:[#allocation0]]
  $region38: #{tpu_custom_call.1} parent=0
    _
  %s10 = ssub.s32 1, %s8
  %s11 = scalar_select 0, %s10, %s8
  // Predicated region
  $region2: #{tpu_custom_call.1} parent=0 // pred_check
    _
  $region3: #{tpu_custom_call.1} parent=0 // pred_check_branch
    %13 = sbr.rel (0) target = $region5
  $region4: #{tpu_custom_call.1} parent=0 // pred_region
    _
  $region5: #{tpu_custom_call.1} parent=0 // pred_fallthru
    _
  // Predicated region
  $region6: #{tpu_custom_call.1} parent=0 // pred_check
    _
  $region7: #{tpu_custom_call.1} parent=0 // pred_check_branch
    %15 = sbr.rel (0) target = $region9
  $region8: #{tpu_custom_call.1} parent=0 // pred_region
    _
  $region9: #{tpu_custom_call.1} parent=0 // pred_fallthru
    _
  // Predicated region
  $region10: #{tpu_custom_call.1} parent=0 // pred_check
    _
  $region11: #{tpu_custom_call.1} parent=0 // pred_check_branch
    %17 = sbr.rel (0) target = $region13
  $region12: #{tpu_custom_call.1} parent=0 // pred_region
    _
  $region13: #{tpu_custom_call.1} parent=0 // pred_fallthru
    _
  // Predicated region
  $region14: #{tpu_custom_call.1} parent=0 // pred_check
    _
  $region15: #{tpu_custom_call.1} parent=0 // pred_check_branch
    %19 = sbr.rel (0) target = $region17
  $region16: #{tpu_custom_call.1} parent=0 // pred_region
    _
  $region17: #{tpu_custom_call.1} parent=0 // pred_fallthru
    _
  // Predicated region
  $region18: #{tpu_custom_call.1} parent=0 // pred_check
    _
  $region19: #{tpu_custom_call.1} parent=0 // pred_check_branch
    %21 = sbr.rel (0) target = $region21
  $region20: #{tpu_custom_call.1} parent=0 // pred_region
    _
  $region21: #{tpu_custom_call.1} parent=0 // pred_fallthru
    _
  // Predicated region
  $region22: #{tpu_custom_call.1} parent=0 // pred_check
    _
  $region23: #{tpu_custom_call.1} parent=0 // pred_check_branch
    %23 = sbr.rel (0) target = $region25
  $region24: #{tpu_custom_call.1} parent=0 // pred_region
    _
  $region25: #{tpu_custom_call.1} parent=0 // pred_fallthru
    _
  // Predicated region
  $region26: #{tpu_custom_call.1} parent=0 // pred_check
    _
  $region27: #{tpu_custom_call.1} parent=0 // pred_check_branch
    %25 = sbr.rel (0) target = $region29
  $region28: #{tpu_custom_call.1} parent=0 // pred_region
    _
  $region29: #{tpu_custom_call.1} parent=0 // pred_fallthru
    _
  %v27 = vld [vmem:[%s1] sm:$0xff]
  %v28 = vld [vmem:[%s1 + $0x8] sm:$0xff]
  %v29 = vld [vmem:[%s1 + $0x10] sm:$0xff]
  %v30 = vld [vmem:[%s1 + $0x18] sm:$0xff]
  %v31 = vld [vmem:[%s1 + $0x20] sm:$0xff]
  %v32 = vld [vmem:[%s1 + $0x28] sm:$0xff]
  %v33 = vld [vmem:[%s1 + $0x30] sm:$0xff]
  %v34 = vld [vmem:[%s1 + $0x38] sm:$0xff]
  %v35 = vld [vmem:[%s1 + $0x40] sm:$0xff]
  %v36 = vld [vmem:[%s1 + $0x48] sm:$0xff]
  %v37 = vld [vmem:[%s1 + $0x50] sm:$0xff]
  %v38 = vld [vmem:[%s1 + $0x58] sm:$0xff]
  %v39 = vld [vmem:[%s1 + $0x60] sm:$0xff]
  %v40 = vld [vmem:[%s1 + $0x68] sm:$0xff]
  %v41 = vld [vmem:[%s1 + $0x70] sm:$0xff]
  %v42 = vld [vmem:[%s1 + $0x78] sm:$0xff]
  %v43 = vld [vmem:[%s1 + $0x80] sm:$0xff]
  %v44 = vld [vmem:[%s1 + $0x88] sm:$0xff]
  %v45 = vld [vmem:[%s2] sm:$0xff]
  %v46 = vld [vmem:[%s2 + $0x8] sm:$0xff]
  %v47 = vld [vmem:[%s2 + $0x10] sm:$0xff]
  %v48 = vld [vmem:[%s2 + $0x18] sm:$0xff]
  %v49 = vld [vmem:[%s2 + $0x20] sm:$0xff]
  %v50 = vld [vmem:[%s2 + $0x28] sm:$0xff]
  %v51 = vld [vmem:[%s2 + $0x30] sm:$0xff]
  %v52 = vld [vmem:[%s2 + $0x38] sm:$0xff]
  %v53 = vld [vmem:[%s2 + $0x40] sm:$0xff]
  %v54 = vld [vmem:[%s2 + $0x48] sm:$0xff]
  %v55 = vld [vmem:[%s2 + $0x50] sm:$0xff]
  %v56 = vld [vmem:[%s2 + $0x58] sm:$0xff]
  %v57 = vld [vmem:[%s2 + $0x60] sm:$0xff]
  %v58 = vld [vmem:[%s2 + $0x68] sm:$0xff]
  %v59 = vld [vmem:[%s2 + $0x70] sm:$0xff]
  %v60 = vld [vmem:[%s2 + $0x78] sm:$0xff]
  %v61 = vld [vmem:[%s2 + $0x80] sm:$0xff]
  %v62 = vld [vmem:[%s2 + $0x88] sm:$0xff]
  %v63 = vld [vmem:[%s3] sm:$0xff]
  %v64 = vld [vmem:[%s3 + $0x8] sm:$0xff]
  %v65 = vld [vmem:[%s3 + $0x10] sm:$0xff]
  %v66 = vld [vmem:[%s3 + $0x18] sm:$0xff]
  %v67 = vld [vmem:[%s3 + $0x20] sm:$0xff]
  %v68 = vld [vmem:[%s3 + $0x28] sm:$0xff]
  %v69 = vld [vmem:[%s3 + $0x30] sm:$0xff]
  %v70 = vld [vmem:[%s3 + $0x38] sm:$0xff]
  %v71 = vld [vmem:[%s3 + $0x40] sm:$0xff]
  %v72 = vld [vmem:[%s3 + $0x48] sm:$0xff]
  %v73 = vld [vmem:[%s3 + $0x50] sm:$0xff]
  %v74 = vld [vmem:[%s3 + $0x58] sm:$0xff]
  %v75 = vld [vmem:[%s3 + $0x60] sm:$0xff]
  %v76 = vld [vmem:[%s3 + $0x68] sm:$0xff]
  %v77 = vld [vmem:[%s3 + $0x70] sm:$0xff]
  %v78 = vld [vmem:[%s3 + $0x78] sm:$0xff]
  %v79 = vld [vmem:[%s3 + $0x80] sm:$0xff]
  %v80 = vld [vmem:[%s3 + $0x88] sm:$0xff]
  %v81 = vld [vmem:[%s3 + $0x90] sm:$0xff]
  %v82 = vld [vmem:[%s3 + $0x98] sm:$0xff]
  %v83 = vld [vmem:[%s3 + $0xa0] sm:$0xff]
  %v84 = vld [vmem:[%s3 + $0xa8] sm:$0xff]
  %v85 = vld [vmem:[%s3 + $0xb0] sm:$0xff]
  %v86 = vld [vmem:[%s3 + $0xb8] sm:$0xff]
  %v87 = vld [vmem:[%s3 + $0xc0] sm:$0xff]
  %v88 = vld [vmem:[%s3 + $0xc8] sm:$0xff]
  %v89 = vld [vmem:[%s3 + $0xd0] sm:$0xff]
  %v90 = vld [vmem:[%s3 + $0xd8] sm:$0xff]
  %v91 = vld [vmem:[%s3 + $0xe0] sm:$0xff]
  %v92 = vld [vmem:[%s3 + $0xe8] sm:$0xff]
  %v93 = vld [vmem:[%s3 + $0xf0] sm:$0xff]
  %v94 = vld [vmem:[%s3 + $0xf8] sm:$0xff]
  %v95 = vld [vmem:[%s4] sm:$0xff]
  %v96 = vld [vmem:[%s4 + $0x8] sm:$0xff]
  %v97 = vld [vmem:[%s4 + $0x10] sm:$0xff]
  %v98 = vld [vmem:[%s4 + $0x18] sm:$0xff]
  %v99 = vld [vmem:[%s4 + $0x20] sm:$0xff]
  %v100 = vld [vmem:[%s4 + $0x28] sm:$0xff]
  %v101 = vld [vmem:[%s4 + $0x30] sm:$0xff]
  %v102 = vld [vmem:[%s4 + $0x38] sm:$0xff]
  %v103 = vld [vmem:[%s4 + $0x40] sm:$0xff]
  %v104 = vld [vmem:[%s4 + $0x48] sm:$0xff]
  %v105 = vld [vmem:[%s4 + $0x50] sm:$0xff]
  %v106 = vld [vmem:[%s4 + $0x58] sm:$0xff]
  %v107 = vld [vmem:[%s4 + $0x60] sm:$0xff]
  %v108 = vld [vmem:[%s4 + $0x68] sm:$0xff]
  %v109 = vld [vmem:[%s4 + $0x70] sm:$0xff]
  %v110 = vld [vmem:[%s4 + $0x78] sm:$0xff]
  %v111 = vld [vmem:[%s4 + $0x80] sm:$0xff]
  %v112 = vld [vmem:[%s4 + $0x88] sm:$0xff]
  %v113 = vld [vmem:[%s4 + $0x90] sm:$0xff]
  %v114 = vld [vmem:[%s4 + $0x98] sm:$0xff]
  %v115 = vld [vmem:[%s4 + $0xa0] sm:$0xff]
  %v116 = vld [vmem:[%s4 + $0xa8] sm:$0xff]
  %v117 = vld [vmem:[%s4 + $0xb0] sm:$0xff]
  %v118 = vld [vmem:[%s4 + $0xb8] sm:$0xff]
  %v119 = vld [vmem:[%s4 + $0xc0] sm:$0xff]
  %v120 = vld [vmem:[%s4 + $0xc8] sm:$0xff]
  %v121 = vld [vmem:[%s4 + $0xd0] sm:$0xff]
  %v122 = vld [vmem:[%s4 + $0xd8] sm:$0xff]
  %v123 = vld [vmem:[%s4 + $0xe0] sm:$0xff]
  %v124 = vld [vmem:[%s4 + $0xe8] sm:$0xff]
  %v125 = vld [vmem:[%s4 + $0xf0] sm:$0xff]
  %v126 = vld [vmem:[%s4 + $0xf8] sm:$0xff]
  %v127 = vld [vmem:[%s5] sm:$0xff]
  %v128 = vld [vmem:[%s5 + $0x8] sm:$0xff]
  %v129 = vld [vmem:[%s5 + $0x10] sm:$0xff]
  %v130 = vld [vmem:[%s5 + $0x18] sm:$0xff]
  %v131 = vld [vmem:[%s5 + $0x20] sm:$0xff]
  %v132 = vld [vmem:[%s5 + $0x28] sm:$0xff]
  %v133 = vld [vmem:[%s5 + $0x30] sm:$0xff]
  %v134 = vld [vmem:[%s5 + $0x38] sm:$0xff]
  %v135 = vld [vmem:[%s5 + $0x40] sm:$0xff]
  %v136 = vld [vmem:[%s5 + $0x48] sm:$0xff]
  %v137 = vld [vmem:[%s5 + $0x50] sm:$0xff]
  %v138 = vld [vmem:[%s5 + $0x58] sm:$0xff]
  %v139 = vld [vmem:[%s5 + $0x60] sm:$0xff]
  %v140 = vld [vmem:[%s5 + $0x68] sm:$0xff]
  %v141 = vld [vmem:[%s5 + $0x70] sm:$0xff]
  %v142 = vld [vmem:[%s5 + $0x78] sm:$0xff]
  %v143 = vld [vmem:[%s5 + $0x80] sm:$0xff]
  %v144 = vld [vmem:[%s5 + $0x88] sm:$0xff]
  %v145 = vld [vmem:[%s6] sm:$0xff]
  %v146 = vld [vmem:[%s6 + $0x8] sm:$0xff]
  %v147 = vld [vmem:[%s6 + $0x10] sm:$0xff]
  %v148 = vld [vmem:[%s6 + $0x18] sm:$0xff]
  %v149 = vld [vmem:[%s6 + $0x20] sm:$0xff]
  %v150 = vld [vmem:[%s6 + $0x28] sm:$0xff]
  %v151 = vld [vmem:[%s6 + $0x30] sm:$0xff]
  %v152 = vld [vmem:[%s6 + $0x38] sm:$0xff]
  %v153 = vld [vmem:[%s6 + $0x40] sm:$0xff]
  %v154 = vld [vmem:[%s6 + $0x48] sm:$0xff]
  %v155 = vld [vmem:[%s6 + $0x50] sm:$0xff]
  %v156 = vld [vmem:[%s6 + $0x58] sm:$0xff]
  %v157 = vld [vmem:[%s6 + $0x60] sm:$0xff]
  %v158 = vld [vmem:[%s6 + $0x68] sm:$0xff]
  %v159 = vld [vmem:[%s6 + $0x70] sm:$0xff]
  %v160 = vld [vmem:[%s6 + $0x78] sm:$0xff]
  %v161 = vld [vmem:[%s6 + $0x80] sm:$0xff]
  %v162 = vld [vmem:[%s6 + $0x88] sm:$0xff]
  %v163 = vld [vmem:[%s0] sm:$0xff]
  %v164 = vld [vmem:[%s0 + $0x8] sm:$0xff]
  %v165 = vld [vmem:[%s0 + $0x10] sm:$0xff]
  %v166 = vld [vmem:[%s0 + $0x18] sm:$0xff]
  %v167 = vld [vmem:[%s0 + $0x20] sm:$0xff]
  %v168 = vld [vmem:[%s0 + $0x28] sm:$0xff]
  %v169 = vld [vmem:[%s0 + $0x30] sm:$0xff]
  %v170 = vld [vmem:[%s0 + $0x38] sm:$0xff]
  %v171 = vld [vmem:[%s0 + $0x40] sm:$0xff]
  %v172 = vld [vmem:[%s0 + $0x48] sm:$0xff]
  %v173 = vld [vmem:[%s0 + $0x50] sm:$0xff]
  %v174 = vld [vmem:[%s0 + $0x58] sm:$0xff]
  %v175 = vld [vmem:[%s0 + $0x60] sm:$0xff]
  %v176 = vld [vmem:[%s0 + $0x68] sm:$0xff]
  %v177 = vld [vmem:[%s0 + $0x70] sm:$0xff]
  %v178 = vld [vmem:[%s0 + $0x78] sm:$0xff]
  %v179 = vld [vmem:[%s0 + $0x80] sm:$0xff]
  %v180 = vld [vmem:[%s0 + $0x88] sm:$0xff]
  %v181 = vld [vmem:[%s0 + $0x90] sm:$0xff]
  %v182 = vld [vmem:[%s0 + $0x98] sm:$0xff]
  %v183 = vld [vmem:[%s0 + $0xa0] sm:$0xff]
  %v184 = vld [vmem:[%s0 + $0xa8] sm:$0xff]
  %v185 = vld [vmem:[%s0 + $0xb0] sm:$0xff]
  %v186 = vld [vmem:[%s0 + $0xb8] sm:$0xff]
  %v187 = vld [vmem:[%s0 + $0xc0] sm:$0xff]
  %v188 = vld [vmem:[%s0 + $0xc8] sm:$0xff]
  %v189 = vld [vmem:[%s0 + $0xd0] sm:$0xff]
  %v190 = vld [vmem:[%s0 + $0xd8] sm:$0xff]
  %v191 = vld [vmem:[%s0 + $0xe0] sm:$0xff]
  %v192 = vld [vmem:[%s0 + $0xe8] sm:$0xff]
  %v193 = vld [vmem:[%s0 + $0xf0] sm:$0xff]
  %v194 = vld [vmem:[%s0 + $0xf8] sm:$0xff]
  %v195 = vpack.c.bf16 %v164, %v163
  %v196 = vpack.c.bf16 %v166, %v165
  %v197 = vpack.c.bf16 %v168, %v167
  %v198 = vpack.c.bf16 %v170, %v169
  %v199 = vpack.c.bf16 %v172, %v171
  %v200 = vpack.c.bf16 %v174, %v173
  %v201 = vpack.c.bf16 %v176, %v175
  %v202 = vpack.c.bf16 %v178, %v177
  %v203 = vpack.c.bf16 %v180, %v179
  %v204 = vpack.c.bf16 %v182, %v181
  %v205 = vpack.c.bf16 %v184, %v183
  %v206 = vpack.c.bf16 %v186, %v185
  %v207 = vpack.c.bf16 %v188, %v187
  %v208 = vpack.c.bf16 %v190, %v189
  %v209 = vpack.c.bf16 %v192, %v191
  %v210 = vpack.c.bf16 %v194, %v193
  %v229 = vunpack.c.l.b16 %v27
  %v230 = vunpack.c.h.b16 %v27
  %v231 = vunpack.c.l.b16 %v28
  %v232 = vunpack.c.h.b16 %v28
  %v233 = vunpack.c.l.b16 %v29
  %v234 = vunpack.c.h.b16 %v29
  %v235 = vunpack.c.l.b16 %v30
  %v236 = vunpack.c.h.b16 %v30
  %v237 = vunpack.c.l.b16 %v31
  %v238 = vunpack.c.h.b16 %v31
  %v239 = vunpack.c.l.b16 %v32
  %v240 = vunpack.c.h.b16 %v32
  %v241 = vunpack.c.l.b16 %v33
  %v242 = vunpack.c.h.b16 %v33
  %v243 = vunpack.c.l.b16 %v34
  %v244 = vunpack.c.h.b16 %v34
  %v245 = vunpack.c.l.b16 %v35
  %v246 = vunpack.c.h.b16 %v35
  %v247 = vunpack.c.l.b16 %v36
  %v248 = vunpack.c.h.b16 %v36
  %v249 = vunpack.c.l.b16 %v37
  %v250 = vunpack.c.h.b16 %v37
  %v251 = vunpack.c.l.b16 %v38
  %v252 = vunpack.c.h.b16 %v38
  %v253 = vunpack.c.l.b16 %v39
  %v254 = vunpack.c.h.b16 %v39
  %v255 = vunpack.c.l.b16 %v40
  %v256 = vunpack.c.h.b16 %v40
  %v257 = vunpack.c.l.b16 %v41
  %v258 = vunpack.c.h.b16 %v41
  %v259 = vunpack.c.l.b16 %v42
  %v260 = vunpack.c.h.b16 %v42
  %v261 = vunpack.c.l.b16 %v43
  %v262 = vunpack.c.h.b16 %v43
  %v263 = vunpack.c.l.b16 %v44
  %v264 = vunpack.c.h.b16 %v44
  %v265 = vpack.c.b16 %v231, %v229
  %v266 = vpack.c.b16 %v232, %v230
  %v267 = vpack.c.b16 %v235, %v233
  %v268 = vpack.c.b16 %v236, %v234
  %v269 = vpack.c.b16 %v239, %v237
  %v270 = vpack.c.b16 %v240, %v238
  %v271 = vpack.c.b16 %v243, %v241
  %v272 = vpack.c.b16 %v244, %v242
  %v273 = vpack.c.b16 %v247, %v245
  %v274 = vpack.c.b16 %v248, %v246
  %v275 = vpack.c.b16 %v251, %v249
  %v276 = vpack.c.b16 %v252, %v250
  %v277 = vpack.c.b16 %v255, %v253
  %v278 = vpack.c.b16 %v256, %v254
  %v279 = vpack.c.b16 %v259, %v257
  %v280 = vpack.c.b16 %v260, %v258
  %v281 = vpack.c.b16 %v263, %v261
  %v282 = vpack.c.b16 %v264, %v262
  %301 = vmatprep.subr.bf16.mxu0 0
  %302 = vmatpush1.bf16.msra.mxu0 %v195
  %303 = vmatprep.subr.bf16.mxu0 0
  %304 = vmatpush1.bf16.msra.mxu0 %v196
  %305 = vmatprep.subr.bf16.mxu0 0
  %306 = vmatpush1.bf16.msra.mxu0 %v197
  %307 = vmatprep.subr.bf16.mxu0 0
  %308 = vmatpush1.bf16.msra.mxu0 %v198
  %309 = vmatprep.subr.bf16.mxu0 0
  %310 = vmatpush1.bf16.msra.mxu0 %v199
  %311 = vmatprep.subr.bf16.mxu0 0
  %312 = vmatpush1.bf16.msra.mxu0 %v200
  %313 = vmatprep.subr.bf16.mxu0 0
  %314 = vmatpush1.bf16.msra.mxu0 %v201
  %315 = vmatprep.subr.bf16.mxu0 0
  %316 = vmatpush1.bf16.msra.mxu0 %v202
  %317 = vmatprep.subr.bf16.mxu0 0
  %318 = vmatpush1.bf16.msra.mxu0 %v203
  %319 = vmatprep.subr.bf16.mxu0 0
  %320 = vmatpush1.bf16.msra.mxu0 %v204
  %321 = vmatprep.subr.bf16.mxu0 0
  %322 = vmatpush1.bf16.msra.mxu0 %v205
  %323 = vmatprep.subr.bf16.mxu0 0
  %324 = vmatpush1.bf16.msra.mxu0 %v206
  %325 = vmatprep.subr.bf16.mxu0 0
  %326 = vmatpush1.bf16.msra.mxu0 %v207
  %327 = vmatprep.subr.bf16.mxu0 0
  %328 = vmatpush1.bf16.msra.mxu0 %v208
  %329 = vmatprep.subr.bf16.mxu0 0
  %330 = vmatpush1.bf16.msra.mxu0 %v209
  %331 = vmatprep.subr.bf16.mxu0 0
  %332 = vmatpush1.bf16.msra.mxu0 %v210
  %333 = vmatprep.mubr.bf16.mxu0 %v266
  %334 = vmatmul.mubr.bf16.gmra.mrb[0].mxu0 %v265
  %v335 = vpop.f32.mrb[0].mxu0
  %v336 = vadd.f32 0.0, %v335
  %v337 = vpop.f32.mrb[0].mxu0
  %v338 = vpop.f32.mrb[0].mxu0
  %v339 = vadd.f32 0.0, %v338
  %v340 = vpop.f32.mrb[0].mxu0
  %341 = vmatprep.mubr.bf16.mxu0 %v268
  %342 = vmatmul.mubr.bf16.gmra.mrb[0].mxu0 %v267
  %v343 = vpop.f32.mrb[0].mxu0
  %v344 = vadd.f32 0.0, %v343
  %v345 = vpop.f32.mrb[0].mxu0
  %v346 = vpop.f32.mrb[0].mxu0
  %v347 = vadd.f32 0.0, %v346
  %v348 = vpop.f32.mrb[0].mxu0
  %349 = vmatprep.mubr.bf16.mxu0 %v270
  %350 = vmatmul.mubr.bf16.gmra.mrb[0].mxu0 %v269
  %v351 = vpop.f32.mrb[0].mxu0
  %v352 = vadd.f32 0.0, %v351
  %v353 = vpop.f32.mrb[0].mxu0
  %v354 = vpop.f32.mrb[0].mxu0
  %v355 = vadd.f32 0.0, %v354
  %v356 = vpop.f32.mrb[0].mxu0
  %357 = vmatprep.mubr.bf16.mxu0 %v272
  %358 = vmatmul.mubr.bf16.gmra.mrb[0].mxu0 %v271
  %v359 = vpop.f32.mrb[0].mxu0
  %v360 = vadd.f32 0.0, %v359
  %v361 = vpop.f32.mrb[0].mxu0
  %v362 = vpop.f32.mrb[0].mxu0
  %v363 = vadd.f32 0.0, %v362
  %v364 = vpop.f32.mrb[0].mxu0
  %365 = vmatprep.mubr.bf16.mxu0 %v274
  %366 = vmatmul.mubr.bf16.gmra.mrb[0].mxu0 %v273
  %v367 = vpop.f32.mrb[0].mxu0
  %v368 = vadd.f32 0.0, %v367
  %v369 = vpop.f32.mrb[0].mxu0
  %v370 = vpop.f32.mrb[0].mxu0
  %v371 = vadd.f32 0.0, %v370
  %v372 = vpop.f32.mrb[0].mxu0
  %373 = vmatprep.mubr.bf16.mxu0 %v276
  %374 = vmatmul.mubr.bf16.gmra.mrb[0].mxu0 %v275
  %v375 = vpop.f32.mrb[0].mxu0
  %v376 = vadd.f32 0.0, %v375
  %v377 = vpop.f32.mrb[0].mxu0
  %v378 = vpop.f32.mrb[0].mxu0
  %v379 = vadd.f32 0.0, %v378
  %v380 = vpop.f32.mrb[0].mxu0
  %381 = vmatprep.mubr.bf16.mxu0 %v278
  %382 = vmatmul.mubr.bf16.gmra.mrb[0].mxu0 %v277
  %v383 = vpop.f32.mrb[0].mxu0
  %v384 = vadd.f32 0.0, %v383
  %v385 = vpop.f32.mrb[0].mxu0
  %v386 = vpop.f32.mrb[0].mxu0
  %v387 = vadd.f32 0.0, %v386
  %v388 = vpop.f32.mrb[0].mxu0
  %389 = vmatprep.mubr.bf16.mxu0 %v280
  %390 = vmatmul.mubr.bf16.gmra.mrb[0].mxu0 %v279
  %v391 = vpop.f32.mrb[0].mxu0
  %v392 = vadd.f32 0.0, %v391
  %v393 = vpop.f32.mrb[0].mxu0
  %v394 = vpop.f32.mrb[0].mxu0
  %v395 = vadd.f32 0.0, %v394
  %v396 = vpop.f32.mrb[0].mxu0
  %397 = vmatprep.mubr.bf16.mxu0 %v282
  %398 = vmatmul.mubr.bf16.gmra.mrb[0].mxu0 %v281
  %v399 = vpop.f32.mrb[0].mxu0
  %v400 = vadd.f32 0.0, %v399
  %v401 = vpop.f32.mrb[0].mxu0
  %v402 = vpop.f32.mrb[0].mxu0
  %v403 = vadd.f32 0.0, %v402
  %v404 = vpop.f32.mrb[0].mxu0
  %405 = vdwg.mxu0
  %v424 = vunpack.c.l.b16 %v45
  %v425 = vunpack.c.h.b16 %v45
  %v426 = vunpack.c.l.b16 %v46
  %v427 = vunpack.c.h.b16 %v46
  %v428 = vunpack.c.l.b16 %v47
  %v429 = vunpack.c.h.b16 %v47
  %v430 = vunpack.c.l.b16 %v48
  %v431 = vunpack.c.h.b16 %v48
  %v432 = vunpack.c.l.b16 %v49
  %v433 = vunpack.c.h.b16 %v49
  %v434 = vunpack.c.l.b16 %v50
  %v435 = vunpack.c.h.b16 %v50
  %v436 = vunpack.c.l.b16 %v51
  %v437 = vunpack.c.h.b16 %v51
  %v438 = vunpack.c.l.b16 %v52
  %v439 = vunpack.c.h.b16 %v52
  %v440 = vunpack.c.l.b16 %v53
  %v441 = vunpack.c.h.b16 %v53
  %v442 = vunpack.c.l.b16 %v54
  %v443 = vunpack.c.h.b16 %v54
  %v444 = vunpack.c.l.b16 %v55
  %v445 = vunpack.c.h.b16 %v55
  %v446 = vunpack.c.l.b16 %v56
  %v447 = vunpack.c.h.b16 %v56
  %v448 = vunpack.c.l.b16 %v57
  %v449 = vunpack.c.h.b16 %v57
  %v450 = vunpack.c.l.b16 %v58
  %v451 = vunpack.c.h.b16 %v58
  %v452 = vunpack.c.l.b16 %v59
  %v453 = vunpack.c.h.b16 %v59
  %v454 = vunpack.c.l.b16 %v60
  %v455 = vunpack.c.h.b16 %v60
  %v456 = vunpack.c.l.b16 %v61
  %v457 = vunpack.c.h.b16 %v61
  %v458 = vunpack.c.l.b16 %v62
  %v459 = vunpack.c.h.b16 %v62
  %v460 = vpack.c.b16 %v426, %v424
  %v461 = vpack.c.b16 %v427, %v425
  %v462 = vpack.c.b16 %v430, %v428
  %v463 = vpack.c.b16 %v431, %v429
  %v464 = vpack.c.b16 %v434, %v432
  %v465 = vpack.c.b16 %v435, %v433
  %v466 = vpack.c.b16 %v438, %v436
  %v467 = vpack.c.b16 %v439, %v437
  %v468 = vpack.c.b16 %v442, %v440
  %v469 = vpack.c.b16 %v443, %v441
  %v470 = vpack.c.b16 %v446, %v444
  %v471 = vpack.c.b16 %v447, %v445
  %v472 = vpack.c.b16 %v450, %v448
  %v473 = vpack.c.b16 %v451, %v449
  %v474 = vpack.c.b16 %v454, %v452
  %v475 = vpack.c.b16 %v455, %v453
  %v476 = vpack.c.b16 %v458, %v456
  %v477 = vpack.c.b16 %v459, %v457
  %496 = vmatprep.subr.bf16.mxu0 0
  %497 = vmatpush1.bf16.msra.mxu0 %v195
  %498 = vmatprep.subr.bf16.mxu0 0
  %499 = vmatpush1.bf16.msra.mxu0 %v196
  %500 = vmatprep.subr.bf16.mxu0 0
  %501 = vmatpush1.bf16.msra.mxu0 %v197
  %502 = vmatprep.subr.bf16.mxu0 0
  %503 = vmatpush1.bf16.msra.mxu0 %v198
  %504 = vmatprep.subr.bf16.mxu0 0
  %505 = vmatpush1.bf16.msra.mxu0 %v199
  %506 = vmatprep.subr.bf16.mxu0 0
  %507 = vmatpush1.bf16.msra.mxu0 %v200
  %508 = vmatprep.subr.bf16.mxu0 0
  %509 = vmatpush1.bf16.msra.mxu0 %v201
  %510 = vmatprep.subr.bf16.mxu0 0
  %511 = vmatpush1.bf16.msra.mxu0 %v202
  %512 = vmatprep.subr.bf16.mxu0 0
  %513 = vmatpush1.bf16.msra.mxu0 %v203
  %514 = vmatprep.subr.bf16.mxu0 0
  %515 = vmatpush1.bf16.msra.mxu0 %v204
  %516 = vmatprep.subr.bf16.mxu0 0
  %517 = vmatpush1.bf16.msra.mxu0 %v205
  %518 = vmatprep.subr.bf16.mxu0 0
  %519 = vmatpush1.bf16.msra.mxu0 %v206
  %520 = vmatprep.subr.bf16.mxu0 0
  %521 = vmatpush1.bf16.msra.mxu0 %v207
  %522 = vmatprep.subr.bf16.mxu0 0
  %523 = vmatpush1.bf16.msra.mxu0 %v208
  %524 = vmatprep.subr.bf16.mxu0 0
  %525 = vmatpush1.bf16.msra.mxu0 %v209
  %526 = vmatprep.subr.bf16.mxu0 0
  %527 = vmatpush1.bf16.msra.mxu0 %v210
  %528 = vmatprep.mubr.bf16.mxu0 %v461
  %529 = vmatmul.mubr.bf16.gmra.mrb[0].mxu0 %v460
  %v530 = vpop.f32.mrb[0].mxu0
  %v531 = vadd.f32 0.0, %v530
  %v532 = vpop.f32.mrb[0].mxu0
  %v533 = vpop.f32.mrb[0].mxu0
  %v534 = vadd.f32 0.0, %v533
  %v535 = vpop.f32.mrb[0].mxu0
  %536 = vmatprep.mubr.bf16.mxu0 %v463
  %537 = vmatmul.mubr.bf16.gmra.mrb[0].mxu0 %v462
  %v538 = vpop.f32.mrb[0].mxu0
  %v539 = vadd.f32 0.0, %v538
  %v540 = vpop.f32.mrb[0].mxu0
  %v541 = vpop.f32.mrb[0].mxu0
  %v542 = vadd.f32 0.0, %v541
  %v543 = vpop.f32.mrb[0].mxu0
  %544 = vmatprep.mubr.bf16.mxu0 %v465
  %545 = vmatmul.mubr.bf16.gmra.mrb[0].mxu0 %v464
  %v546 = vpop.f32.mrb[0].mxu0
  %v547 = vadd.f32 0.0, %v546
  %v548 = vpop.f32.mrb[0].mxu0
  %v549 = vpop.f32.mrb[0].mxu0
  %v550 = vadd.f32 0.0, %v549
  %v551 = vpop.f32.mrb[0].mxu0
  %552 = vmatprep.mubr.bf16.mxu0 %v467
  %553 = vmatmul.mubr.bf16.gmra.mrb[0].mxu0 %v466
  %v554 = vpop.f32.mrb[0].mxu0
  %v555 = vadd.f32 0.0, %v554
  %v556 = vpop.f32.mrb[0].mxu0
  %v557 = vpop.f32.mrb[0].mxu0
  %v558 = vadd.f32 0.0, %v557
  %v559 = vpop.f32.mrb[0].mxu0
  %560 = vmatprep.mubr.bf16.mxu0 %v469
  %561 = vmatmul.mubr.bf16.gmra.mrb[0].mxu0 %v468
  %v562 = vpop.f32.mrb[0].mxu0
  %v563 = vadd.f32 0.0, %v562
  %v564 = vpop.f32.mrb[0].mxu0
  %v565 = vpop.f32.mrb[0].mxu0
  %v566 = vadd.f32 0.0, %v565
  %v567 = vpop.f32.mrb[0].mxu0
  %568 = vmatprep.mubr.bf16.mxu0 %v471
  %569 = vmatmul.mubr.bf16.gmra.mrb[0].mxu0 %v470
  %v570 = vpop.f32.mrb[0].mxu0
  %v571 = vadd.f32 0.0, %v570
  %v572 = vpop.f32.mrb[0].mxu0
  %v573 = vpop.f32.mrb[0].mxu0
  %v574 = vadd.f32 0.0, %v573
  %v575 = vpop.f32.mrb[0].mxu0
  %576 = vmatprep.mubr.bf16.mxu0 %v473
  %577 = vmatmul.mubr.bf16.gmra.mrb[0].mxu0 %v472
  %v578 = vpop.f32.mrb[0].mxu0
  %v579 = vadd.f32 0.0, %v578
  %v580 = vpop.f32.mrb[0].mxu0
  %v581 = vpop.f32.mrb[0].mxu0
  %v582 = vadd.f32 0.0, %v581
  %v583 = vpop.f32.mrb[0].mxu0
  %584 = vmatprep.mubr.bf16.mxu0 %v475
  %585 = vmatmul.mubr.bf16.gmra.mrb[0].mxu0 %v474
  %v586 = vpop.f32.mrb[0].mxu0
  %v587 = vadd.f32 0.0, %v586
  %v588 = vpop.f32.mrb[0].mxu0
  %v589 = vpop.f32.mrb[0].mxu0
  %v590 = vadd.f32 0.0, %v589
  %v591 = vpop.f32.mrb[0].mxu0
  %592 = vmatprep.mubr.bf16.mxu0 %v477
  %593 = vmatmul.mubr.bf16.gmra.mrb[0].mxu0 %v476
  %v594 = vpop.f32.mrb[0].mxu0
  %v595 = vadd.f32 0.0, %v594
  %v596 = vpop.f32.mrb[0].mxu0
  %v597 = vpop.f32.mrb[0].mxu0
  %v598 = vadd.f32 0.0, %v597
  %v599 = vpop.f32.mrb[0].mxu0
  %600 = vdwg.mxu0
  %v601 = vmul.f32 %v336, %v127
  %v602 = vmul.f32 %v339, %v128
  %v603 = vmul.f32 %v344, %v129
  %v604 = vmul.f32 %v347, %v130
  %v605 = vmul.f32 %v352, %v131
  %v606 = vmul.f32 %v355, %v132
  %v607 = vmul.f32 %v360, %v133
  %v608 = vmul.f32 %v363, %v134
  %v609 = vmul.f32 %v368, %v135
  %v610 = vmul.f32 %v371, %v136
  %v611 = vmul.f32 %v376, %v137
  %v612 = vmul.f32 %v379, %v138
  %v613 = vmul.f32 %v384, %v139
  %v614 = vmul.f32 %v387, %v140
  %v615 = vmul.f32 %v392, %v141
  %v616 = vmul.f32 %v395, %v142
  %v617 = vmul.f32 %v400, %v143
  %v618 = vmul.f32 %v403, %v144
  %v619 = vmul.f32 %v531, %v145
  %v620 = vmul.f32 %v534, %v146
  %v621 = vmul.f32 %v539, %v147
  %v622 = vmul.f32 %v542, %v148
  %v623 = vmul.f32 %v547, %v149
  %v624 = vmul.f32 %v550, %v150
  %v625 = vmul.f32 %v555, %v151
  %v626 = vmul.f32 %v558, %v152
  %v627 = vmul.f32 %v563, %v153
  %v628 = vmul.f32 %v566, %v154
  %v629 = vmul.f32 %v571, %v155
  %v630 = vmul.f32 %v574, %v156
  %v631 = vmul.f32 %v579, %v157
  %v632 = vmul.f32 %v582, %v158
  %v633 = vmul.f32 %v587, %v159
  %v634 = vmul.f32 %v590, %v160
  %v635 = vmul.f32 %v595, %v161
  %v636 = vmul.f32 %v598, %v162
  %v637 = vsub.f32 %v601, %v619
  %v638 = vsub.f32 %v602, %v620
  %v639 = vsub.f32 %v603, %v621
  %v640 = vsub.f32 %v604, %v622
  %v641 = vsub.f32 %v605, %v623
  %v642 = vsub.f32 %v606, %v624
  %v643 = vsub.f32 %v607, %v625
  %v644 = vsub.f32 %v608, %v626
  %v645 = vsub.f32 %v609, %v627
  %v646 = vsub.f32 %v610, %v628
  %v647 = vsub.f32 %v611, %v629
  %v648 = vsub.f32 %v612, %v630
  %v649 = vsub.f32 %v613, %v631
  %v650 = vsub.f32 %v614, %v632
  %v651 = vsub.f32 %v615, %v633
  %v652 = vsub.f32 %v616, %v634
  %v653 = vsub.f32 %v617, %v635
  %v654 = vsub.f32 %v618, %v636
  %v655 = vpack.c.bf16 %v638, %v637
  %v656 = vpack.c.bf16 %v640, %v639
  %v657 = vpack.c.bf16 %v642, %v641
  %v658 = vpack.c.bf16 %v644, %v643
  %v659 = vpack.c.bf16 %v646, %v645
  %v660 = vpack.c.bf16 %v648, %v647
  %v661 = vpack.c.bf16 %v650, %v649
  %v662 = vpack.c.bf16 %v652, %v651
  %v663 = vpack.c.bf16 %v654, %v653
  %v664 = vmul.f32 %v336, %v145
  %v665 = vmul.f32 %v339, %v146
  %v666 = vmul.f32 %v344, %v147
  %v667 = vmul.f32 %v347, %v148
  %v668 = vmul.f32 %v352, %v149
  %v669 = vmul.f32 %v355, %v150
  %v670 = vmul.f32 %v360, %v151
  %v671 = vmul.f32 %v363, %v152
  %v672 = vmul.f32 %v368, %v153
  %v673 = vmul.f32 %v371, %v154
  %v674 = vmul.f32 %v376, %v155
  %v675 = vmul.f32 %v379, %v156
  %v676 = vmul.f32 %v384, %v157
  %v677 = vmul.f32 %v387, %v158
  %v678 = vmul.f32 %v392, %v159
  %v679 = vmul.f32 %v395, %v160
  %v680 = vmul.f32 %v400, %v161
  %v681 = vmul.f32 %v403, %v162
  %v682 = vmul.f32 %v531, %v127
  %v683 = vmul.f32 %v534, %v128
  %v684 = vmul.f32 %v539, %v129
  %v685 = vmul.f32 %v542, %v130
  %v686 = vmul.f32 %v547, %v131
  %v687 = vmul.f32 %v550, %v132
  %v688 = vmul.f32 %v555, %v133
  %v689 = vmul.f32 %v558, %v134
  %v690 = vmul.f32 %v563, %v135
  %v691 = vmul.f32 %v566, %v136
  %v692 = vmul.f32 %v571, %v137
  %v693 = vmul.f32 %v574, %v138
  %v694 = vmul.f32 %v579, %v139
  %v695 = vmul.f32 %v582, %v140
  %v696 = vmul.f32 %v587, %v141
  %v697 = vmul.f32 %v590, %v142
  %v698 = vmul.f32 %v595, %v143
  %v699 = vmul.f32 %v598, %v144
  %v700 = vadd.f32 %v664, %v682
  %v701 = vadd.f32 %v665, %v683
  %v702 = vadd.f32 %v666, %v684
  %v703 = vadd.f32 %v667, %v685
  %v704 = vadd.f32 %v668, %v686
  %v705 = vadd.f32 %v669, %v687
  %v706 = vadd.f32 %v670, %v688
  %v707 = vadd.f32 %v671, %v689
  %v708 = vadd.f32 %v672, %v690
  %v709 = vadd.f32 %v673, %v691
  %v710 = vadd.f32 %v674, %v692
  %v711 = vadd.f32 %v675, %v693
  %v712 = vadd.f32 %v676, %v694
  %v713 = vadd.f32 %v677, %v695
  %v714 = vadd.f32 %v678, %v696
  %v715 = vadd.f32 %v679, %v697
  %v716 = vadd.f32 %v680, %v698
  %v717 = vadd.f32 %v681, %v699
  %v718 = vpack.c.bf16 %v701, %v700
  %v719 = vpack.c.bf16 %v703, %v702
  %v720 = vpack.c.bf16 %v705, %v704
  %v721 = vpack.c.bf16 %v707, %v706
  %v722 = vpack.c.bf16 %v709, %v708
  %v723 = vpack.c.bf16 %v711, %v710
  %v724 = vpack.c.bf16 %v713, %v712
  %v725 = vpack.c.bf16 %v715, %v714
  %v726 = vpack.c.bf16 %v717, %v716
  %v759 = vunpack.c.l.b16 %v95
  %v760 = vunpack.c.h.b16 %v95
  %v761 = vunpack.c.l.b16 %v96
  %v762 = vunpack.c.h.b16 %v96
  %v763 = vunpack.c.l.b16 %v97
  %v764 = vunpack.c.h.b16 %v97
  %v765 = vunpack.c.l.b16 %v98
  %v766 = vunpack.c.h.b16 %v98
  %v767 = vunpack.c.l.b16 %v99
  %v768 = vunpack.c.h.b16 %v99
  %v769 = vunpack.c.l.b16 %v100
  %v770 = vunpack.c.h.b16 %v100
  %v771 = vunpack.c.l.b16 %v101
  %v772 = vunpack.c.h.b16 %v101
  %v773 = vunpack.c.l.b16 %v102
  %v774 = vunpack.c.h.b16 %v102
  %v775 = vunpack.c.l.b16 %v103
  %v776 = vunpack.c.h.b16 %v103
  %v777 = vunpack.c.l.b16 %v104
  %v778 = vunpack.c.h.b16 %v104
  %v779 = vunpack.c.l.b16 %v105
  %v780 = vunpack.c.h.b16 %v105
  %v781 = vunpack.c.l.b16 %v106
  %v782 = vunpack.c.h.b16 %v106
  %v783 = vunpack.c.l.b16 %v107
  %v784 = vunpack.c.h.b16 %v107
  %v785 = vunpack.c.l.b16 %v108
  %v786 = vunpack.c.h.b16 %v108
  %v787 = vunpack.c.l.b16 %v109
  %v788 = vunpack.c.h.b16 %v109
  %v789 = vunpack.c.l.b16 %v110
  %v790 = vunpack.c.h.b16 %v110
  %v791 = vunpack.c.l.b16 %v111
  %v792 = vunpack.c.h.b16 %v111
  %v793 = vunpack.c.l.b16 %v112
  %v794 = vunpack.c.h.b16 %v112
  %v795 = vunpack.c.l.b16 %v113
  %v796 = vunpack.c.h.b16 %v113
  %v797 = vunpack.c.l.b16 %v114
  %v798 = vunpack.c.h.b16 %v114
  %v799 = vunpack.c.l.b16 %v115
  %v800 = vunpack.c.h.b16 %v115
  %v801 = vunpack.c.l.b16 %v116
  %v802 = vunpack.c.h.b16 %v116
  %v803 = vunpack.c.l.b16 %v117
  %v804 = vunpack.c.h.b16 %v117
  %v805 = vunpack.c.l.b16 %v118
  %v806 = vunpack.c.h.b16 %v118
  %v807 = vunpack.c.l.b16 %v119
  %v808 = vunpack.c.h.b16 %v119
  %v809 = vunpack.c.l.b16 %v120
  %v810 = vunpack.c.h.b16 %v120
  %v811 = vunpack.c.l.b16 %v121
  %v812 = vunpack.c.h.b16 %v121
  %v813 = vunpack.c.l.b16 %v122
  %v814 = vunpack.c.h.b16 %v122
  %v815 = vunpack.c.l.b16 %v123
  %v816 = vunpack.c.h.b16 %v123
  %v817 = vunpack.c.l.b16 %v124
  %v818 = vunpack.c.h.b16 %v124
  %v819 = vunpack.c.l.b16 %v125
  %v820 = vunpack.c.h.b16 %v125
  %v821 = vunpack.c.l.b16 %v126
  %v822 = vunpack.c.h.b16 %v126
  %v823 = vpack.c.b16 %v761, %v759
  %v824 = vpack.c.b16 %v762, %v760
  %v825 = vpack.c.b16 %v765, %v763
  %v826 = vpack.c.b16 %v766, %v764
  %v827 = vpack.c.b16 %v769, %v767
  %v828 = vpack.c.b16 %v770, %v768
  %v829 = vpack.c.b16 %v773, %v771
  %v830 = vpack.c.b16 %v774, %v772
  %v831 = vpack.c.b16 %v777, %v775
  %v832 = vpack.c.b16 %v778, %v776
  %v833 = vpack.c.b16 %v781, %v779
  %v834 = vpack.c.b16 %v782, %v780
  %v835 = vpack.c.b16 %v785, %v783
  %v836 = vpack.c.b16 %v786, %v784
  %v837 = vpack.c.b16 %v789, %v787
  %v838 = vpack.c.b16 %v790, %v788
  %v839 = vpack.c.b16 %v793, %v791
  %v840 = vpack.c.b16 %v794, %v792
  %v841 = vpack.c.b16 %v797, %v795
  %v842 = vpack.c.b16 %v798, %v796
  %v843 = vpack.c.b16 %v801, %v799
  %v844 = vpack.c.b16 %v802, %v800
  %v845 = vpack.c.b16 %v805, %v803
  %v846 = vpack.c.b16 %v806, %v804
  %v847 = vpack.c.b16 %v809, %v807
  %v848 = vpack.c.b16 %v810, %v808
  %v849 = vpack.c.b16 %v813, %v811
  %v850 = vpack.c.b16 %v814, %v812
  %v851 = vpack.c.b16 %v817, %v815
  %v852 = vpack.c.b16 %v818, %v816
  %v853 = vpack.c.b16 %v821, %v819
  %v854 = vpack.c.b16 %v822, %v820
  %vm871 = vcmask 130048
  %v873 = vsel %vm871, %v824, 0
  %v876 = vsel %vm871, %v826, 0
  %v879 = vsel %vm871, %v828, 0
  %v882 = vsel %vm871, %v830, 0
  %v885 = vsel %vm871, %v832, 0
  %v888 = vsel %vm871, %v834, 0
  %v891 = vsel %vm871, %v836, 0
  %v894 = vsel %vm871, %v838, 0
  %v897 = vsel %vm871, %v840, 0
  %v900 = vsel %vm871, %v842, 0
  %v903 = vsel %vm871, %v844, 0
  %v906 = vsel %vm871, %v846, 0
  %v909 = vsel %vm871, %v848, 0
  %v912 = vsel %vm871, %v850, 0
  %v915 = vsel %vm871, %v852, 0
  %v918 = vsel %vm871, %v854, 0
  %920 = vmatprep.subr.bf16.mxu0 0
  %921 = vmatpush1.bf16.msra.mxu0 %v718
  %922 = vmatprep.subr.bf16.mxu0 0
  %923 = vmatpush1.bf16.msra.mxu0 %v719
  %924 = vmatprep.subr.bf16.mxu0 0
  %925 = vmatpush1.bf16.msra.mxu0 %v720
  %926 = vmatprep.subr.bf16.mxu0 0
  %927 = vmatpush1.bf16.msra.mxu0 %v721
  %928 = vmatprep.subr.bf16.mxu0 0
  %929 = vmatpush1.bf16.msra.mxu0 %v722
  %930 = vmatprep.subr.bf16.mxu0 0
  %931 = vmatpush1.bf16.msra.mxu0 %v723
  %932 = vmatprep.subr.bf16.mxu0 0
  %933 = vmatpush1.bf16.msra.mxu0 %v724
  %934 = vmatprep.subr.bf16.mxu0 0
  %935 = vmatpush1.bf16.msra.mxu0 %v725
  %936 = vmatprep.subr.bf16.mxu0 0
  %937 = vmatpush1.bf16.msra.mxu0 %v726
  %938 = vmatprep.subr.bf16.mxu0 0
  %939 = vmatpush1.bf16.msra.mxu0 0
  %940 = vmatprep.subr.bf16.mxu0 0
  %941 = vmatpush1.bf16.msra.mxu0 0
  %942 = vmatprep.subr.bf16.mxu0 0
  %943 = vmatpush1.bf16.msra.mxu0 0
  %944 = vmatprep.subr.bf16.mxu0 0
  %945 = vmatpush1.bf16.msra.mxu0 0
  %946 = vmatprep.subr.bf16.mxu0 0
  %947 = vmatpush1.bf16.msra.mxu0 0
  %948 = vmatprep.subr.bf16.mxu0 0
  %949 = vmatpush1.bf16.msra.mxu0 0
  %950 = vmatprep.subr.bf16.mxu0 0
  %951 = vmatpush1.bf16.msra.mxu0 0
  %952 = vmatprep.mubr.bf16.mxu0 %v873
  %953 = vmatmul.mubr.bf16.gmra.mrb[0].mxu0 %v823
  %v954 = vpop.f32.mrb[0].mxu0
  %v955 = vadd.f32 0.0, %v954
  %v956 = vpop.f32.mrb[0].mxu0
  %v957 = vpop.f32.mrb[0].mxu0
  %v958 = vadd.f32 0.0, %v957
  %v959 = vpop.f32.mrb[0].mxu0
  %960 = vmatprep.mubr.bf16.mxu0 %v876
  %961 = vmatmul.mubr.bf16.gmra.mrb[0].mxu0 %v825
  %v962 = vpop.f32.mrb[0].mxu0
  %v963 = vadd.f32 0.0, %v962
  %v964 = vpop.f32.mrb[0].mxu0
  %v965 = vpop.f32.mrb[0].mxu0
  %v966 = vadd.f32 0.0, %v965
  %v967 = vpop.f32.mrb[0].mxu0
  %968 = vmatprep.mubr.bf16.mxu0 %v879
  %969 = vmatmul.mubr.bf16.gmra.mrb[0].mxu0 %v827
  %v970 = vpop.f32.mrb[0].mxu0
  %v971 = vadd.f32 0.0, %v970
  %v972 = vpop.f32.mrb[0].mxu0
  %v973 = vpop.f32.mrb[0].mxu0
  %v974 = vadd.f32 0.0, %v973
  %v975 = vpop.f32.mrb[0].mxu0
  %976 = vmatprep.mubr.bf16.mxu0 %v882
  %977 = vmatmul.mubr.bf16.gmra.mrb[0].mxu0 %v829
  %v978 = vpop.f32.mrb[0].mxu0
  %v979 = vadd.f32 0.0, %v978
  %v980 = vpop.f32.mrb[0].mxu0
  %v981 = vpop.f32.mrb[0].mxu0
  %v982 = vadd.f32 0.0, %v981
  %v983 = vpop.f32.mrb[0].mxu0
  %984 = vmatprep.mubr.bf16.mxu0 %v885
  %985 = vmatmul.mubr.bf16.gmra.mrb[0].mxu0 %v831
  %v986 = vpop.f32.mrb[0].mxu0
  %v987 = vadd.f32 0.0, %v986
  %v988 = vpop.f32.mrb[0].mxu0
  %v989 = vpop.f32.mrb[0].mxu0
  %v990 = vadd.f32 0.0, %v989
  %v991 = vpop.f32.mrb[0].mxu0
  %992 = vmatprep.mubr.bf16.mxu0 %v888
  %993 = vmatmul.mubr.bf16.gmra.mrb[0].mxu0 %v833
  %v994 = vpop.f32.mrb[0].mxu0
  %v995 = vadd.f32 0.0, %v994
  %v996 = vpop.f32.mrb[0].mxu0
  %v997 = vpop.f32.mrb[0].mxu0
  %v998 = vadd.f32 0.0, %v997
  %v999 = vpop.f32.mrb[0].mxu0
  %1000 = vmatprep.mubr.bf16.mxu0 %v891
  %1001 = vmatmul.mubr.bf16.gmra.mrb[0].mxu0 %v835
  %v1002 = vpop.f32.mrb[0].mxu0
  %v1003 = vadd.f32 0.0, %v1002
  %v1004 = vpop.f32.mrb[0].mxu0
  %v1005 = vpop.f32.mrb[0].mxu0
  %v1006 = vadd.f32 0.0, %v1005
  %v1007 = vpop.f32.mrb[0].mxu0
  %1008 = vmatprep.mubr.bf16.mxu0 %v894
  %1009 = vmatmul.mubr.bf16.gmra.mrb[0].mxu0 %v837
  %v1010 = vpop.f32.mrb[0].mxu0
  %v1011 = vadd.f32 0.0, %v1010
  %v1012 = vpop.f32.mrb[0].mxu0
  %v1013 = vpop.f32.mrb[0].mxu0
  %v1014 = vadd.f32 0.0, %v1013
  %v1015 = vpop.f32.mrb[0].mxu0
  %1016 = vmatprep.mubr.bf16.mxu0 %v897
  %1017 = vmatmul.mubr.bf16.gmra.mrb[0].mxu0 %v839
  %v1018 = vpop.f32.mrb[0].mxu0
  %v1019 = vadd.f32 0.0, %v1018
  %v1020 = vpop.f32.mrb[0].mxu0
  %v1021 = vpop.f32.mrb[0].mxu0
  %v1022 = vadd.f32 0.0, %v1021
  %v1023 = vpop.f32.mrb[0].mxu0
  %1024 = vmatprep.mubr.bf16.mxu0 %v900
  %1025 = vmatmul.mubr.bf16.gmra.mrb[0].mxu0 %v841
  %v1026 = vpop.f32.mrb[0].mxu0
  %v1027 = vadd.f32 0.0, %v1026
  %v1028 = vpop.f32.mrb[0].mxu0
  %v1029 = vpop.f32.mrb[0].mxu0
  %v1030 = vadd.f32 0.0, %v1029
  %v1031 = vpop.f32.mrb[0].mxu0
  %1032 = vmatprep.mubr.bf16.mxu0 %v903
  %1033 = vmatmul.mubr.bf16.gmra.mrb[0].mxu0 %v843
  %v1034 = vpop.f32.mrb[0].mxu0
  %v1035 = vadd.f32 0.0, %v1034
  %v1036 = vpop.f32.mrb[0].mxu0
  %v1037 = vpop.f32.mrb[0].mxu0
  %v1038 = vadd.f32 0.0, %v1037
  %v1039 = vpop.f32.mrb[0].mxu0
  %1040 = vmatprep.mubr.bf16.mxu0 %v906
  %1041 = vmatmul.mubr.bf16.gmra.mrb[0].mxu0 %v845
  %v1042 = vpop.f32.mrb[0].mxu0
  %v1043 = vadd.f32 0.0, %v1042
  %v1044 = vpop.f32.mrb[0].mxu0
  %v1045 = vpop.f32.mrb[0].mxu0
  %v1046 = vadd.f32 0.0, %v1045
  %v1047 = vpop.f32.mrb[0].mxu0
  %1048 = vmatprep.mubr.bf16.mxu0 %v909
  %1049 = vmatmul.mubr.bf16.gmra.mrb[0].mxu0 %v847
  %v1050 = vpop.f32.mrb[0].mxu0
  %v1051 = vadd.f32 0.0, %v1050
  %v1052 = vpop.f32.mrb[0].mxu0
  %v1053 = vpop.f32.mrb[0].mxu0
  %v1054 = vadd.f32 0.0, %v1053
  %v1055 = vpop.f32.mrb[0].mxu0
  %1056 = vmatprep.mubr.bf16.mxu0 %v912
  %1057 = vmatmul.mubr.bf16.gmra.mrb[0].mxu0 %v849
  %v1058 = vpop.f32.mrb[0].mxu0
  %v1059 = vadd.f32 0.0, %v1058
  %v1060 = vpop.f32.mrb[0].mxu0
  %v1061 = vpop.f32.mrb[0].mxu0
  %v1062 = vadd.f32 0.0, %v1061
  %v1063 = vpop.f32.mrb[0].mxu0
  %1064 = vmatprep.mubr.bf16.mxu0 %v915
  %1065 = vmatmul.mubr.bf16.gmra.mrb[0].mxu0 %v851
  %v1066 = vpop.f32.mrb[0].mxu0
  %v1067 = vadd.f32 0.0, %v1066
  %v1068 = vpop.f32.mrb[0].mxu0
  %v1069 = vpop.f32.mrb[0].mxu0
  %v1070 = vadd.f32 0.0, %v1069
  %v1071 = vpop.f32.mrb[0].mxu0
  %1072 = vmatprep.mubr.bf16.mxu0 %v918
  %1073 = vmatmul.mubr.bf16.gmra.mrb[0].mxu0 %v853
  %v1074 = vpop.f32.mrb[0].mxu0
  %v1075 = vadd.f32 0.0, %v1074
  %v1076 = vpop.f32.mrb[0].mxu0
  %v1077 = vpop.f32.mrb[0].mxu0
  %v1078 = vadd.f32 0.0, %v1077
  %v1079 = vpop.f32.mrb[0].mxu0
  %1080 = vdwg.mxu0
  %v1113 = vunpack.c.l.b16 %v63
  %v1114 = vunpack.c.h.b16 %v63
  %v1115 = vunpack.c.l.b16 %v64
  %v1116 = vunpack.c.h.b16 %v64
  %v1117 = vunpack.c.l.b16 %v65
  %v1118 = vunpack.c.h.b16 %v65
  %v1119 = vunpack.c.l.b16 %v66
  %v1120 = vunpack.c.h.b16 %v66
  %v1121 = vunpack.c.l.b16 %v67
  %v1122 = vunpack.c.h.b16 %v67
  %v1123 = vunpack.c.l.b16 %v68
  %v1124 = vunpack.c.h.b16 %v68
  %v1125 = vunpack.c.l.b16 %v69
  %v1126 = vunpack.c.h.b16 %v69
  %v1127 = vunpack.c.l.b16 %v70
  %v1128 = vunpack.c.h.b16 %v70
  %v1129 = vunpack.c.l.b16 %v71
  %v1130 = vunpack.c.h.b16 %v71
  %v1131 = vunpack.c.l.b16 %v72
  %v1132 = vunpack.c.h.b16 %v72
  %v1133 = vunpack.c.l.b16 %v73
  %v1134 = vunpack.c.h.b16 %v73
  %v1135 = vunpack.c.l.b16 %v74
  %v1136 = vunpack.c.h.b16 %v74
  %v1137 = vunpack.c.l.b16 %v75
  %v1138 = vunpack.c.h.b16 %v75
  %v1139 = vunpack.c.l.b16 %v76
  %v1140 = vunpack.c.h.b16 %v76
  %v1141 = vunpack.c.l.b16 %v77
  %v1142 = vunpack.c.h.b16 %v77
  %v1143 = vunpack.c.l.b16 %v78
  %v1144 = vunpack.c.h.b16 %v78
  %v1145 = vunpack.c.l.b16 %v79
  %v1146 = vunpack.c.h.b16 %v79
  %v1147 = vunpack.c.l.b16 %v80
  %v1148 = vunpack.c.h.b16 %v80
  %v1149 = vunpack.c.l.b16 %v81
  %v1150 = vunpack.c.h.b16 %v81
  %v1151 = vunpack.c.l.b16 %v82
  %v1152 = vunpack.c.h.b16 %v82
  %v1153 = vunpack.c.l.b16 %v83
  %v1154 = vunpack.c.h.b16 %v83
  %v1155 = vunpack.c.l.b16 %v84
  %v1156 = vunpack.c.h.b16 %v84
  %v1157 = vunpack.c.l.b16 %v85
  %v1158 = vunpack.c.h.b16 %v85
  %v1159 = vunpack.c.l.b16 %v86
  %v1160 = vunpack.c.h.b16 %v86
  %v1161 = vunpack.c.l.b16 %v87
  %v1162 = vunpack.c.h.b16 %v87
  %v1163 = vunpack.c.l.b16 %v88
  %v1164 = vunpack.c.h.b16 %v88
  %v1165 = vunpack.c.l.b16 %v89
  %v1166 = vunpack.c.h.b16 %v89
  %v1167 = vunpack.c.l.b16 %v90
  %v1168 = vunpack.c.h.b16 %v90
  %v1169 = vunpack.c.l.b16 %v91
  %v1170 = vunpack.c.h.b16 %v91
  %v1171 = vunpack.c.l.b16 %v92
  %v1172 = vunpack.c.h.b16 %v92
  %v1173 = vunpack.c.l.b16 %v93
  %v1174 = vunpack.c.h.b16 %v93
  %v1175 = vunpack.c.l.b16 %v94
  %v1176 = vunpack.c.h.b16 %v94
  %v1177 = vpack.c.b16 %v1115, %v1113
  %v1178 = vpack.c.b16 %v1116, %v1114
  %v1179 = vpack.c.b16 %v1119, %v1117
  %v1180 = vpack.c.b16 %v1120, %v1118
  %v1181 = vpack.c.b16 %v1123, %v1121
  %v1182 = vpack.c.b16 %v1124, %v1122
  %v1183 = vpack.c.b16 %v1127, %v1125
  %v1184 = vpack.c.b16 %v1128, %v1126
  %v1185 = vpack.c.b16 %v1131, %v1129
  %v1186 = vpack.c.b16 %v1132, %v1130
  %v1187 = vpack.c.b16 %v1135, %v1133
  %v1188 = vpack.c.b16 %v1136, %v1134
  %v1189 = vpack.c.b16 %v1139, %v1137
  %v1190 = vpack.c.b16 %v1140, %v1138
  %v1191 = vpack.c.b16 %v1143, %v1141
  %v1192 = vpack.c.b16 %v1144, %v1142
  %v1193 = vpack.c.b16 %v1147, %v1145
  %v1194 = vpack.c.b16 %v1148, %v1146
  %v1195 = vpack.c.b16 %v1151, %v1149
  %v1196 = vpack.c.b16 %v1152, %v1150
  %v1197 = vpack.c.b16 %v1155, %v1153
  %v1198 = vpack.c.b16 %v1156, %v1154
  %v1199 = vpack.c.b16 %v1159, %v1157
  %v1200 = vpack.c.b16 %v1160, %v1158
  %v1201 = vpack.c.b16 %v1163, %v1161
  %v1202 = vpack.c.b16 %v1164, %v1162
  %v1203 = vpack.c.b16 %v1167, %v1165
  %v1204 = vpack.c.b16 %v1168, %v1166
  %v1205 = vpack.c.b16 %v1171, %v1169
  %v1206 = vpack.c.b16 %v1172, %v1170
  %v1207 = vpack.c.b16 %v1175, %v1173
  %v1208 = vpack.c.b16 %v1176, %v1174
  %v1226 = vsel %vm871, %v1178, 0
  %v1229 = vsel %vm871, %v1180, 0
  %v1232 = vsel %vm871, %v1182, 0
  %v1235 = vsel %vm871, %v1184, 0
  %v1238 = vsel %vm871, %v1186, 0
  %v1241 = vsel %vm871, %v1188, 0
  %v1244 = vsel %vm871, %v1190, 0
  %v1247 = vsel %vm871, %v1192, 0
  %v1250 = vsel %vm871, %v1194, 0
  %v1253 = vsel %vm871, %v1196, 0
  %v1256 = vsel %vm871, %v1198, 0
  %v1259 = vsel %vm871, %v1200, 0
  %v1262 = vsel %vm871, %v1202, 0
  %v1265 = vsel %vm871, %v1204, 0
  %v1268 = vsel %vm871, %v1206, 0
  %v1271 = vsel %vm871, %v1208, 0
  %1273 = vmatprep.subr.bf16.mxu0 0
  %1274 = vmatpush1.bf16.msra.mxu0 %v655
  %1275 = vmatprep.subr.bf16.mxu0 0
  %1276 = vmatpush1.bf16.msra.mxu0 %v656
  %1277 = vmatprep.subr.bf16.mxu0 0
  %1278 = vmatpush1.bf16.msra.mxu0 %v657
  %1279 = vmatprep.subr.bf16.mxu0 0
  %1280 = vmatpush1.bf16.msra.mxu0 %v658
  %1281 = vmatprep.subr.bf16.mxu0 0
  %1282 = vmatpush1.bf16.msra.mxu0 %v659
  %1283 = vmatprep.subr.bf16.mxu0 0
  %1284 = vmatpush1.bf16.msra.mxu0 %v660
  %1285 = vmatprep.subr.bf16.mxu0 0
  %1286 = vmatpush1.bf16.msra.mxu0 %v661
  %1287 = vmatprep.subr.bf16.mxu0 0
  %1288 = vmatpush1.bf16.msra.mxu0 %v662
  %1289 = vmatprep.subr.bf16.mxu0 0
  %1290 = vmatpush1.bf16.msra.mxu0 %v663
  %1291 = vmatprep.subr.bf16.mxu0 0
  %1292 = vmatpush1.bf16.msra.mxu0 0
  %1293 = vmatprep.subr.bf16.mxu0 0
  %1294 = vmatpush1.bf16.msra.mxu0 0
  %1295 = vmatprep.subr.bf16.mxu0 0
  %1296 = vmatpush1.bf16.msra.mxu0 0
  %1297 = vmatprep.subr.bf16.mxu0 0
  %1298 = vmatpush1.bf16.msra.mxu0 0
  %1299 = vmatprep.subr.bf16.mxu0 0
  %1300 = vmatpush1.bf16.msra.mxu0 0
  %1301 = vmatprep.subr.bf16.mxu0 0
  %1302 = vmatpush1.bf16.msra.mxu0 0
  %1303 = vmatprep.subr.bf16.mxu0 0
  %1304 = vmatpush1.bf16.msra.mxu0 0
  %1305 = vmatprep.mubr.bf16.mxu0 %v1226
  %1306 = vmatmul.mubr.bf16.gmra.mrb[0].mxu0 %v1177
  %v1307 = vpop.f32.mrb[0].mxu0
  %v1308 = vadd.f32 %v955, %v1307
  %v1309 = vpop.f32.mrb[0].mxu0
  %v1310 = vpop.f32.mrb[0].mxu0
  %v1311 = vadd.f32 %v958, %v1310
  %v1312 = vpop.f32.mrb[0].mxu0
  %1313 = vmatprep.mubr.bf16.mxu0 %v1229
  %1314 = vmatmul.mubr.bf16.gmra.mrb[0].mxu0 %v1179
  %v1315 = vpop.f32.mrb[0].mxu0
  %v1316 = vadd.f32 %v963, %v1315
  %v1317 = vpop.f32.mrb[0].mxu0
  %v1318 = vpop.f32.mrb[0].mxu0
  %v1319 = vadd.f32 %v966, %v1318
  %v1320 = vpop.f32.mrb[0].mxu0
  %1321 = vmatprep.mubr.bf16.mxu0 %v1232
  %1322 = vmatmul.mubr.bf16.gmra.mrb[0].mxu0 %v1181
  %v1323 = vpop.f32.mrb[0].mxu0
  %v1324 = vadd.f32 %v971, %v1323
  %v1325 = vpop.f32.mrb[0].mxu0
  %v1326 = vpop.f32.mrb[0].mxu0
  %v1327 = vadd.f32 %v974, %v1326
  %v1328 = vpop.f32.mrb[0].mxu0
  %1329 = vmatprep.mubr.bf16.mxu0 %v1235
  %1330 = vmatmul.mubr.bf16.gmra.mrb[0].mxu0 %v1183
  %v1331 = vpop.f32.mrb[0].mxu0
  %v1332 = vadd.f32 %v979, %v1331
  %v1333 = vpop.f32.mrb[0].mxu0
  %v1334 = vpop.f32.mrb[0].mxu0
  %v1335 = vadd.f32 %v982, %v1334
  %v1336 = vpop.f32.mrb[0].mxu0
  %1337 = vmatprep.mubr.bf16.mxu0 %v1238
  %1338 = vmatmul.mubr.bf16.gmra.mrb[0].mxu0 %v1185
  %v1339 = vpop.f32.mrb[0].mxu0
  %v1340 = vadd.f32 %v987, %v1339
  %v1341 = vpop.f32.mrb[0].mxu0
  %v1342 = vpop.f32.mrb[0].mxu0
  %v1343 = vadd.f32 %v990, %v1342
  %v1344 = vpop.f32.mrb[0].mxu0
  %1345 = vmatprep.mubr.bf16.mxu0 %v1241
  %1346 = vmatmul.mubr.bf16.gmra.mrb[0].mxu0 %v1187
  %v1347 = vpop.f32.mrb[0].mxu0
  %v1348 = vadd.f32 %v995, %v1347
  %v1349 = vpop.f32.mrb[0].mxu0
  %v1350 = vpop.f32.mrb[0].mxu0
  %v1351 = vadd.f32 %v998, %v1350
  %v1352 = vpop.f32.mrb[0].mxu0
  %1353 = vmatprep.mubr.bf16.mxu0 %v1244
  %1354 = vmatmul.mubr.bf16.gmra.mrb[0].mxu0 %v1189
  %v1355 = vpop.f32.mrb[0].mxu0
  %v1356 = vadd.f32 %v1003, %v1355
  %v1357 = vpop.f32.mrb[0].mxu0
  %v1358 = vpop.f32.mrb[0].mxu0
  %v1359 = vadd.f32 %v1006, %v1358
  %v1360 = vpop.f32.mrb[0].mxu0
  %1361 = vmatprep.mubr.bf16.mxu0 %v1247
  %1362 = vmatmul.mubr.bf16.gmra.mrb[0].mxu0 %v1191
  %v1363 = vpop.f32.mrb[0].mxu0
  %v1364 = vadd.f32 %v1011, %v1363
  %v1365 = vpop.f32.mrb[0].mxu0
  %v1366 = vpop.f32.mrb[0].mxu0
  %v1367 = vadd.f32 %v1014, %v1366
  %v1368 = vpop.f32.mrb[0].mxu0
  %1369 = vmatprep.mubr.bf16.mxu0 %v1250
  %1370 = vmatmul.mubr.bf16.gmra.mrb[0].mxu0 %v1193
  %v1371 = vpop.f32.mrb[0].mxu0
  %v1372 = vadd.f32 %v1019, %v1371
  %v1373 = vpop.f32.mrb[0].mxu0
  %v1374 = vpop.f32.mrb[0].mxu0
  %v1375 = vadd.f32 %v1022, %v1374
  %v1376 = vpop.f32.mrb[0].mxu0
  %1377 = vmatprep.mubr.bf16.mxu0 %v1253
  %1378 = vmatmul.mubr.bf16.gmra.mrb[0].mxu0 %v1195
  %v1379 = vpop.f32.mrb[0].mxu0
  %v1380 = vadd.f32 %v1027, %v1379
  %v1381 = vpop.f32.mrb[0].mxu0
  %v1382 = vpop.f32.mrb[0].mxu0
  %v1383 = vadd.f32 %v1030, %v1382
  %v1384 = vpop.f32.mrb[0].mxu0
  %1385 = vmatprep.mubr.bf16.mxu0 %v1256
  %1386 = vmatmul.mubr.bf16.gmra.mrb[0].mxu0 %v1197
  %v1387 = vpop.f32.mrb[0].mxu0
  %v1388 = vadd.f32 %v1035, %v1387
  %v1389 = vpop.f32.mrb[0].mxu0
  %v1390 = vpop.f32.mrb[0].mxu0
  %v1391 = vadd.f32 %v1038, %v1390
  %v1392 = vpop.f32.mrb[0].mxu0
  %1393 = vmatprep.mubr.bf16.mxu0 %v1259
  %1394 = vmatmul.mubr.bf16.gmra.mrb[0].mxu0 %v1199
  %v1395 = vpop.f32.mrb[0].mxu0
  %v1396 = vadd.f32 %v1043, %v1395
  %v1397 = vpop.f32.mrb[0].mxu0
  %v1398 = vpop.f32.mrb[0].mxu0
  %v1399 = vadd.f32 %v1046, %v1398
  %v1400 = vpop.f32.mrb[0].mxu0
  %1401 = vmatprep.mubr.bf16.mxu0 %v1262
  %1402 = vmatmul.mubr.bf16.gmra.mrb[0].mxu0 %v1201
  %v1403 = vpop.f32.mrb[0].mxu0
  %v1404 = vadd.f32 %v1051, %v1403
  %v1405 = vpop.f32.mrb[0].mxu0
  %v1406 = vpop.f32.mrb[0].mxu0
  %v1407 = vadd.f32 %v1054, %v1406
  %v1408 = vpop.f32.mrb[0].mxu0
  %1409 = vmatprep.mubr.bf16.mxu0 %v1265
  %1410 = vmatmul.mubr.bf16.gmra.mrb[0].mxu0 %v1203
  %v1411 = vpop.f32.mrb[0].mxu0
  %v1412 = vadd.f32 %v1059, %v1411
  %v1413 = vpop.f32.mrb[0].mxu0
  %v1414 = vpop.f32.mrb[0].mxu0
  %v1415 = vadd.f32 %v1062, %v1414
  %v1416 = vpop.f32.mrb[0].mxu0
  %1417 = vmatprep.mubr.bf16.mxu0 %v1268
  %1418 = vmatmul.mubr.bf16.gmra.mrb[0].mxu0 %v1205
  %v1419 = vpop.f32.mrb[0].mxu0
  %v1420 = vadd.f32 %v1067, %v1419
  %v1421 = vpop.f32.mrb[0].mxu0
  %v1422 = vpop.f32.mrb[0].mxu0
  %v1423 = vadd.f32 %v1070, %v1422
  %v1424 = vpop.f32.mrb[0].mxu0
  %1425 = vmatprep.mubr.bf16.mxu0 %v1271
  %1426 = vmatmul.mubr.bf16.gmra.mrb[0].mxu0 %v1207
  %v1427 = vpop.f32.mrb[0].mxu0
  %v1428 = vadd.f32 %v1075, %v1427
  %v1429 = vpop.f32.mrb[0].mxu0
  %v1430 = vpop.f32.mrb[0].mxu0
  %v1431 = vadd.f32 %v1078, %v1430
  %v1432 = vpop.f32.mrb[0].mxu0
  %1433 = vdwg.mxu0
  %vm1434 = vcmask 261120
  %1435 = vst.msk [vmem:[%s7] sm:$0xff] %vm1434, %v1308
  %1436 = vst.msk [vmem:[%s7 + $0x8] sm:$0xff] %vm1434, %v1311
  %1437 = vst.msk [vmem:[%s7 + $0x10] sm:$0xff] %vm1434, %v1316
  %1438 = vst.msk [vmem:[%s7 + $0x18] sm:$0xff] %vm1434, %v1319
  %1439 = vst.msk [vmem:[%s7 + $0x20] sm:$0xff] %vm1434, %v1324
  %1440 = vst.msk [vmem:[%s7 + $0x28] sm:$0xff] %vm1434, %v1327
  %1441 = vst.msk [vmem:[%s7 + $0x30] sm:$0xff] %vm1434, %v1332
  %1442 = vst.msk [vmem:[%s7 + $0x38] sm:$0xff] %vm1434, %v1335
  %1443 = vst.msk [vmem:[%s7 + $0x40] sm:$0xff] %vm1434, %v1340
  %1444 = vst.msk [vmem:[%s7 + $0x48] sm:$0xff] %vm1434, %v1343
  %1445 = vst.msk [vmem:[%s7 + $0x50] sm:$0xff] %vm1434, %v1348
  %1446 = vst.msk [vmem:[%s7 + $0x58] sm:$0xff] %vm1434, %v1351
  %1447 = vst.msk [vmem:[%s7 + $0x60] sm:$0xff] %vm1434, %v1356
  %1448 = vst.msk [vmem:[%s7 + $0x68] sm:$0xff] %vm1434, %v1359
  %1449 = vst.msk [vmem:[%s7 + $0x70] sm:$0xff] %vm1434, %v1364
  %1450 = vst.msk [vmem:[%s7 + $0x78] sm:$0xff] %vm1434, %v1367
  %1451 = vst.msk [vmem:[%s7 + $0x80] sm:$0xff] %vm1434, %v1372
  %1452 = vst.msk [vmem:[%s7 + $0x88] sm:$0xff] %vm1434, %v1375
  %1453 = vst.msk [vmem:[%s7 + $0x90] sm:$0xff] %vm1434, %v1380
  %1454 = vst.msk [vmem:[%s7 + $0x98] sm:$0xff] %vm1434, %v1383
  %1455 = vst.msk [vmem:[%s7 + $0xa0] sm:$0xff] %vm1434, %v1388
  %1456 = vst.msk [vmem:[%s7 + $0xa8] sm:$0xff] %vm1434, %v1391
  %1457 = vst.msk [vmem:[%s7 + $0xb0] sm:$0xff] %vm1434, %v1396
  %1458 = vst.msk [vmem:[%s7 + $0xb8] sm:$0xff] %vm1434, %v1399
  %1459 = vst.msk [vmem:[%s7 + $0xc0] sm:$0xff] %vm1434, %v1404
  %1460 = vst.msk [vmem:[%s7 + $0xc8] sm:$0xff] %vm1434, %v1407
  %1461 = vst.msk [vmem:[%s7 + $0xd0] sm:$0xff] %vm1434, %v1412
  %1462 = vst.msk [vmem:[%s7 + $0xd8] sm:$0xff] %vm1434, %v1415
  %1463 = vst.msk [vmem:[%s7 + $0xe0] sm:$0xff] %vm1434, %v1420
  %1464 = vst.msk [vmem:[%s7 + $0xe8] sm:$0xff] %vm1434, %v1423
  %1465 = vst.msk [vmem:[%s7 + $0xf0] sm:$0xff] %vm1434, %v1428
  %1466 = vst.msk [vmem:[%s7 + $0xf8] sm:$0xff] %vm1434, %v1431
  %s1467 = scalar_lea.vmem %s0, 256
  %v1468 = vld [vmem:[%s1467] sm:$0xff]
  %v1469 = vld [vmem:[%s1467 + $0x8] sm:$0xff]
  %v1470 = vld [vmem:[%s1467 + $0x10] sm:$0xff]
  %v1471 = vld [vmem:[%s1467 + $0x18] sm:$0xff]
  %v1472 = vld [vmem:[%s1467 + $0x20] sm:$0xff]
  %v1473 = vld [vmem:[%s1467 + $0x28] sm:$0xff]
  %v1474 = vld [vmem:[%s1467 + $0x30] sm:$0xff]
  %v1475 = vld [vmem:[%s1467 + $0x38] sm:$0xff]
  %v1476 = vld [vmem:[%s1467 + $0x40] sm:$0xff]
  %v1477 = vld [vmem:[%s1467 + $0x48] sm:$0xff]
  %v1478 = vld [vmem:[%s1467 + $0x50] sm:$0xff]
  %v1479 = vld [vmem:[%s1467 + $0x58] sm:$0xff]
  %v1480 = vld [vmem:[%s1467 + $0x60] sm:$0xff]
  %v1481 = vld [vmem:[%s1467 + $0x68] sm:$0xff]
  %v1482 = vld [vmem:[%s1467 + $0x70] sm:$0xff]
  %v1483 = vld [vmem:[%s1467 + $0x78] sm:$0xff]
  %v1484 = vld [vmem:[%s1467 + $0x80] sm:$0xff]
  %v1485 = vld [vmem:[%s1467 + $0x88] sm:$0xff]
  %v1486 = vld [vmem:[%s1467 + $0x90] sm:$0xff]
  %v1487 = vld [vmem:[%s1467 + $0x98] sm:$0xff]
  %v1488 = vld [vmem:[%s1467 + $0xa0] sm:$0xff]
  %v1489 = vld [vmem:[%s1467 + $0xa8] sm:$0xff]
  %v1490 = vld [vmem:[%s1467 + $0xb0] sm:$0xff]
  %v1491 = vld [vmem:[%s1467 + $0xb8] sm:$0xff]
  %v1492 = vld [vmem:[%s1467 + $0xc0] sm:$0xff]
  %v1493 = vld [vmem:[%s1467 + $0xc8] sm:$0xff]
  %v1494 = vld [vmem:[%s1467 + $0xd0] sm:$0xff]
  %v1495 = vld [vmem:[%s1467 + $0xd8] sm:$0xff]
  %v1496 = vld [vmem:[%s1467 + $0xe0] sm:$0xff]
  %v1497 = vld [vmem:[%s1467 + $0xe8] sm:$0xff]
  %v1498 = vld [vmem:[%s1467 + $0xf0] sm:$0xff]
  %v1499 = vld [vmem:[%s1467 + $0xf8] sm:$0xff]
  %v1500 = vpack.c.bf16 %v1469, %v1468
  %v1501 = vpack.c.bf16 %v1471, %v1470
  %v1502 = vpack.c.bf16 %v1473, %v1472
  %v1503 = vpack.c.bf16 %v1475, %v1474
  %v1504 = vpack.c.bf16 %v1477, %v1476
  %v1505 = vpack.c.bf16 %v1479, %v1478
  %v1506 = vpack.c.bf16 %v1481, %v1480
  %v1507 = vpack.c.bf16 %v1483, %v1482
  %v1508 = vpack.c.bf16 %v1485, %v1484
  %v1509 = vpack.c.bf16 %v1487, %v1486
  %v1510 = vpack.c.bf16 %v1489, %v1488
  %v1511 = vpack.c.bf16 %v1491, %v1490
  %v1512 = vpack.c.bf16 %v1493, %v1492
  %v1513 = vpack.c.bf16 %v1495, %v1494
  %v1514 = vpack.c.bf16 %v1497, %v1496
  %v1515 = vpack.c.bf16 %v1499, %v1498
  %1516 = vmatprep.subr.bf16.mxu0 0
  %1517 = vmatpush1.bf16.msra.mxu0 %v1500
  %1518 = vmatprep.subr.bf16.mxu0 0
  %1519 = vmatpush1.bf16.msra.mxu0 %v1501
  %1520 = vmatprep.subr.bf16.mxu0 0
  %1521 = vmatpush1.bf16.msra.mxu0 %v1502
  %1522 = vmatprep.subr.bf16.mxu0 0
  %1523 = vmatpush1.bf16.msra.mxu0 %v1503
  %1524 = vmatprep.subr.bf16.mxu0 0
  %1525 = vmatpush1.bf16.msra.mxu0 %v1504
  %1526 = vmatprep.subr.bf16.mxu0 0
  %1527 = vmatpush1.bf16.msra.mxu0 %v1505
  %1528 = vmatprep.subr.bf16.mxu0 0
  %1529 = vmatpush1.bf16.msra.mxu0 %v1506
  %1530 = vmatprep.subr.bf16.mxu0 0
  %1531 = vmatpush1.bf16.msra.mxu0 %v1507
  %1532 = vmatprep.subr.bf16.mxu0 0
  %1533 = vmatpush1.bf16.msra.mxu0 %v1508
  %1534 = vmatprep.subr.bf16.mxu0 0
  %1535 = vmatpush1.bf16.msra.mxu0 %v1509
  %1536 = vmatprep.subr.bf16.mxu0 0
  %1537 = vmatpush1.bf16.msra.mxu0 %v1510
  %1538 = vmatprep.subr.bf16.mxu0 0
  %1539 = vmatpush1.bf16.msra.mxu0 %v1511
  %1540 = vmatprep.subr.bf16.mxu0 0
  %1541 = vmatpush1.bf16.msra.mxu0 %v1512
  %1542 = vmatprep.subr.bf16.mxu0 0
  %1543 = vmatpush1.bf16.msra.mxu0 %v1513
  %1544 = vmatprep.subr.bf16.mxu0 0
  %1545 = vmatpush1.bf16.msra.mxu0 %v1514
  %1546 = vmatprep.subr.bf16.mxu0 0
  %1547 = vmatpush1.bf16.msra.mxu0 %v1515
  %1548 = vmatprep.mubr.bf16.mxu0 %v266
  %1549 = vmatmul.mubr.bf16.gmra.mrb[0].mxu0 %v265
  %v1550 = vpop.f32.mrb[0].mxu0
  %v1551 = vadd.f32 0.0, %v1550
  %v1552 = vpop.f32.mrb[0].mxu0
  %v1553 = vpop.f32.mrb[0].mxu0
  %v1554 = vadd.f32 0.0, %v1553
  %v1555 = vpop.f32.mrb[0].mxu0
  %1556 = vmatprep.mubr.bf16.mxu0 %v268
  %1557 = vmatmul.mubr.bf16.gmra.mrb[0].mxu0 %v267
  %v1558 = vpop.f32.mrb[0].mxu0
  %v1559 = vadd.f32 0.0, %v1558
  %v1560 = vpop.f32.mrb[0].mxu0
  %v1561 = vpop.f32.mrb[0].mxu0
  %v1562 = vadd.f32 0.0, %v1561
  %v1563 = vpop.f32.mrb[0].mxu0
  %1564 = vmatprep.mubr.bf16.mxu0 %v270
  %1565 = vmatmul.mubr.bf16.gmra.mrb[0].mxu0 %v269
  %v1566 = vpop.f32.mrb[0].mxu0
  %v1567 = vadd.f32 0.0, %v1566
  %v1568 = vpop.f32.mrb[0].mxu0
  %v1569 = vpop.f32.mrb[0].mxu0
  %v1570 = vadd.f32 0.0, %v1569
  %v1571 = vpop.f32.mrb[0].mxu0
  %1572 = vmatprep.mubr.bf16.mxu0 %v272
  %1573 = vmatmul.mubr.bf16.gmra.mrb[0].mxu0 %v271
  %v1574 = vpop.f32.mrb[0].mxu0
  %v1575 = vadd.f32 0.0, %v1574
  %v1576 = vpop.f32.mrb[0].mxu0
  %v1577 = vpop.f32.mrb[0].mxu0
  %v1578 = vadd.f32 0.0, %v1577
  %v1579 = vpop.f32.mrb[0].mxu0
  %1580 = vmatprep.mubr.bf16.mxu0 %v274
  %1581 = vmatmul.mubr.bf16.gmra.mrb[0].mxu0 %v273
  %v1582 = vpop.f32.mrb[0].mxu0
  %v1583 = vadd.f32 0.0, %v1582
  %v1584 = vpop.f32.mrb[0].mxu0
  %v1585 = vpop.f32.mrb[0].mxu0
  %v1586 = vadd.f32 0.0, %v1585
  %v1587 = vpop.f32.mrb[0].mxu0
  %1588 = vmatprep.mubr.bf16.mxu0 %v276
  %1589 = vmatmul.mubr.bf16.gmra.mrb[0].mxu0 %v275
  %v1590 = vpop.f32.mrb[0].mxu0
  %v1591 = vadd.f32 0.0, %v1590
  %v1592 = vpop.f32.mrb[0].mxu0
  %v1593 = vpop.f32.mrb[0].mxu0
  %v1594 = vadd.f32 0.0, %v1593
  %v1595 = vpop.f32.mrb[0].mxu0
  %1596 = vmatprep.mubr.bf16.mxu0 %v278
  %1597 = vmatmul.mubr.bf16.gmra.mrb[0].mxu0 %v277
  %v1598 = vpop.f32.mrb[0].mxu0
  %v1599 = vadd.f32 0.0, %v1598
  %v1600 = vpop.f32.mrb[0].mxu0
  %v1601 = vpop.f32.mrb[0].mxu0
  %v1602 = vadd.f32 0.0, %v1601
  %v1603 = vpop.f32.mrb[0].mxu0
  %1604 = vmatprep.mubr.bf16.mxu0 %v280
  %1605 = vmatmul.mubr.bf16.gmra.mrb[0].mxu0 %v279
  %v1606 = vpop.f32.mrb[0].mxu0
  %v1607 = vadd.f32 0.0, %v1606
  %v1608 = vpop.f32.mrb[0].mxu0
  %v1609 = vpop.f32.mrb[0].mxu0
  %v1610 = vadd.f32 0.0, %v1609
  %v1611 = vpop.f32.mrb[0].mxu0
  %1612 = vmatprep.mubr.bf16.mxu0 %v282
  %1613 = vmatmul.mubr.bf16.gmra.mrb[0].mxu0 %v281
  %v1614 = vpop.f32.mrb[0].mxu0
  %v1615 = vadd.f32 0.0, %v1614
  %v1616 = vpop.f32.mrb[0].mxu0
  %v1617 = vpop.f32.mrb[0].mxu0
  %v1618 = vadd.f32 0.0, %v1617
  %v1619 = vpop.f32.mrb[0].mxu0
  %1620 = vdwg.mxu0
  %1621 = vmatprep.subr.bf16.mxu0 0
  %1622 = vmatpush1.bf16.msra.mxu0 %v1500
  %1623 = vmatprep.subr.bf16.mxu0 0
  %1624 = vmatpush1.bf16.msra.mxu0 %v1501
  %1625 = vmatprep.subr.bf16.mxu0 0
  %1626 = vmatpush1.bf16.msra.mxu0 %v1502
  %1627 = vmatprep.subr.bf16.mxu0 0
  %1628 = vmatpush1.bf16.msra.mxu0 %v1503
  %1629 = vmatprep.subr.bf16.mxu0 0
  %1630 = vmatpush1.bf16.msra.mxu0 %v1504
  %1631 = vmatprep.subr.bf16.mxu0 0
  %1632 = vmatpush1.bf16.msra.mxu0 %v1505
  %1633 = vmatprep.subr.bf16.mxu0 0
  %1634 = vmatpush1.bf16.msra.mxu0 %v1506
  %1635 = vmatprep.subr.bf16.mxu0 0
  %1636 = vmatpush1.bf16.msra.mxu0 %v1507
  %1637 = vmatprep.subr.bf16.mxu0 0
  %1638 = vmatpush1.bf16.msra.mxu0 %v1508
  %1639 = vmatprep.subr.bf16.mxu0 0
  %1640 = vmatpush1.bf16.msra.mxu0 %v1509
  %1641 = vmatprep.subr.bf16.mxu0 0
  %1642 = vmatpush1.bf16.msra.mxu0 %v1510
  %1643 = vmatprep.subr.bf16.mxu0 0
  %1644 = vmatpush1.bf16.msra.mxu0 %v1511
  %1645 = vmatprep.subr.bf16.mxu0 0
  %1646 = vmatpush1.bf16.msra.mxu0 %v1512
  %1647 = vmatprep.subr.bf16.mxu0 0
  %1648 = vmatpush1.bf16.msra.mxu0 %v1513
  %1649 = vmatprep.subr.bf16.mxu0 0
  %1650 = vmatpush1.bf16.msra.mxu0 %v1514
  %1651 = vmatprep.subr.bf16.mxu0 0
  %1652 = vmatpush1.bf16.msra.mxu0 %v1515
  %1653 = vmatprep.mubr.bf16.mxu0 %v461
  %1654 = vmatmul.mubr.bf16.gmra.mrb[0].mxu0 %v460
  %v1655 = vpop.f32.mrb[0].mxu0
  %v1656 = vadd.f32 0.0, %v1655
  %v1657 = vpop.f32.mrb[0].mxu0
  %v1658 = vpop.f32.mrb[0].mxu0
  %v1659 = vadd.f32 0.0, %v1658
  %v1660 = vpop.f32.mrb[0].mxu0
  %1661 = vmatprep.mubr.bf16.mxu0 %v463
  %1662 = vmatmul.mubr.bf16.gmra.mrb[0].mxu0 %v462
  %v1663 = vpop.f32.mrb[0].mxu0
  %v1664 = vadd.f32 0.0, %v1663
  %v1665 = vpop.f32.mrb[0].mxu0
  %v1666 = vpop.f32.mrb[0].mxu0
  %v1667 = vadd.f32 0.0, %v1666
  %v1668 = vpop.f32.mrb[0].mxu0
  %1669 = vmatprep.mubr.bf16.mxu0 %v465
  %1670 = vmatmul.mubr.bf16.gmra.mrb[0].mxu0 %v464
  %v1671 = vpop.f32.mrb[0].mxu0
  %v1672 = vadd.f32 0.0, %v1671
  %v1673 = vpop.f32.mrb[0].mxu0
  %v1674 = vpop.f32.mrb[0].mxu0
  %v1675 = vadd.f32 0.0, %v1674
  %v1676 = vpop.f32.mrb[0].mxu0
  %1677 = vmatprep.mubr.bf16.mxu0 %v467
  %1678 = vmatmul.mubr.bf16.gmra.mrb[0].mxu0 %v466
  %v1679 = vpop.f32.mrb[0].mxu0
  %v1680 = vadd.f32 0.0, %v1679
  %v1681 = vpop.f32.mrb[0].mxu0
  %v1682 = vpop.f32.mrb[0].mxu0
  %v1683 = vadd.f32 0.0, %v1682
  %v1684 = vpop.f32.mrb[0].mxu0
  %1685 = vmatprep.mubr.bf16.mxu0 %v469
  %1686 = vmatmul.mubr.bf16.gmra.mrb[0].mxu0 %v468
  %v1687 = vpop.f32.mrb[0].mxu0
  %v1688 = vadd.f32 0.0, %v1687
  %v1689 = vpop.f32.mrb[0].mxu0
  %v1690 = vpop.f32.mrb[0].mxu0
  %v1691 = vadd.f32 0.0, %v1690
  %v1692 = vpop.f32.mrb[0].mxu0
  %1693 = vmatprep.mubr.bf16.mxu0 %v471
  %1694 = vmatmul.mubr.bf16.gmra.mrb[0].mxu0 %v470
  %v1695 = vpop.f32.mrb[0].mxu0
  %v1696 = vadd.f32 0.0, %v1695
  %v1697 = vpop.f32.mrb[0].mxu0
  %v1698 = vpop.f32.mrb[0].mxu0
  %v1699 = vadd.f32 0.0, %v1698
  %v1700 = vpop.f32.mrb[0].mxu0
  %1701 = vmatprep.mubr.bf16.mxu0 %v473
  %1702 = vmatmul.mubr.bf16.gmra.mrb[0].mxu0 %v472
  %v1703 = vpop.f32.mrb[0].mxu0
  %v1704 = vadd.f32 0.0, %v1703
  %v1705 = vpop.f32.mrb[0].mxu0
  %v1706 = vpop.f32.mrb[0].mxu0
  %v1707 = vadd.f32 0.0, %v1706
  %v1708 = vpop.f32.mrb[0].mxu0
  %1709 = vmatprep.mubr.bf16.mxu0 %v475
  %1710 = vmatmul.mubr.bf16.gmra.mrb[0].mxu0 %v474
  %v1711 = vpop.f32.mrb[0].mxu0
  %v1712 = vadd.f32 0.0, %v1711
  %v1713 = vpop.f32.mrb[0].mxu0
  %v1714 = vpop.f32.mrb[0].mxu0
  %v1715 = vadd.f32 0.0, %v1714
  %v1716 = vpop.f32.mrb[0].mxu0
  %1717 = vmatprep.mubr.bf16.mxu0 %v477
  %1718 = vmatmul.mubr.bf16.gmra.mrb[0].mxu0 %v476
  %v1719 = vpop.f32.mrb[0].mxu0
  %v1720 = vadd.f32 0.0, %v1719
  %v1721 = vpop.f32.mrb[0].mxu0
  %v1722 = vpop.f32.mrb[0].mxu0
  %v1723 = vadd.f32 0.0, %v1722
  %v1724 = vpop.f32.mrb[0].mxu0
  %1725 = vdwg.mxu0
  %v1726 = vmul.f32 %v1551, %v127
  %v1727 = vmul.f32 %v1554, %v128
  %v1728 = vmul.f32 %v1559, %v129
  %v1729 = vmul.f32 %v1562, %v130
  %v1730 = vmul.f32 %v1567, %v131
  %v1731 = vmul.f32 %v1570, %v132
  %v1732 = vmul.f32 %v1575, %v133
  %v1733 = vmul.f32 %v1578, %v134
  %v1734 = vmul.f32 %v1583, %v135
  %v1735 = vmul.f32 %v1586, %v136
  %v1736 = vmul.f32 %v1591, %v137
  %v1737 = vmul.f32 %v1594, %v138
  %v1738 = vmul.f32 %v1599, %v139
  %v1739 = vmul.f32 %v1602, %v140
  %v1740 = vmul.f32 %v1607, %v141
  %v1741 = vmul.f32 %v1610, %v142
  %v1742 = vmul.f32 %v1615, %v143
  %v1743 = vmul.f32 %v1618, %v144
  %v1744 = vmul.f32 %v1656, %v145
  %v1745 = vmul.f32 %v1659, %v146
  %v1746 = vmul.f32 %v1664, %v147
  %v1747 = vmul.f32 %v1667, %v148
  %v1748 = vmul.f32 %v1672, %v149
  %v1749 = vmul.f32 %v1675, %v150
  %v1750 = vmul.f32 %v1680, %v151
  %v1751 = vmul.f32 %v1683, %v152
  %v1752 = vmul.f32 %v1688, %v153
  %v1753 = vmul.f32 %v1691, %v154
  %v1754 = vmul.f32 %v1696, %v155
  %v1755 = vmul.f32 %v1699, %v156
  %v1756 = vmul.f32 %v1704, %v157
  %v1757 = vmul.f32 %v1707, %v158
  %v1758 = vmul.f32 %v1712, %v159
  %v1759 = vmul.f32 %v1715, %v160
  %v1760 = vmul.f32 %v1720, %v161
  %v1761 = vmul.f32 %v1723, %v162
  %v1762 = vsub.f32 %v1726, %v1744
  %v1763 = vsub.f32 %v1727, %v1745
  %v1764 = vsub.f32 %v1728, %v1746
  %v1765 = vsub.f32 %v1729, %v1747
  %v1766 = vsub.f32 %v1730, %v1748
  %v1767 = vsub.f32 %v1731, %v1749
  %v1768 = vsub.f32 %v1732, %v1750
  %v1769 = vsub.f32 %v1733, %v1751
  %v1770 = vsub.f32 %v1734, %v1752
  %v1771 = vsub.f32 %v1735, %v1753
  %v1772 = vsub.f32 %v1736, %v1754
  %v1773 = vsub.f32 %v1737, %v1755
  %v1774 = vsub.f32 %v1738, %v1756
  %v1775 = vsub.f32 %v1739, %v1757
  %v1776 = vsub.f32 %v1740, %v1758
  %v1777 = vsub.f32 %v1741, %v1759
  %v1778 = vsub.f32 %v1742, %v1760
  %v1779 = vsub.f32 %v1743, %v1761
  %v1780 = vpack.c.bf16 %v1763, %v1762
  %v1781 = vpack.c.bf16 %v1765, %v1764
  %v1782 = vpack.c.bf16 %v1767, %v1766
  %v1783 = vpack.c.bf16 %v1769, %v1768
  %v1784 = vpack.c.bf16 %v1771, %v1770
  %v1785 = vpack.c.bf16 %v1773, %v1772
  %v1786 = vpack.c.bf16 %v1775, %v1774
  %v1787 = vpack.c.bf16 %v1777, %v1776
  %v1788 = vpack.c.bf16 %v1779, %v1778
  %v1789 = vmul.f32 %v1551, %v145
  %v1790 = vmul.f32 %v1554, %v146
  %v1791 = vmul.f32 %v1559, %v147
  %v1792 = vmul.f32 %v1562, %v148
  %v1793 = vmul.f32 %v1567, %v149
  %v1794 = vmul.f32 %v1570, %v150
  %v1795 = vmul.f32 %v1575, %v151
  %v1796 = vmul.f32 %v1578, %v152
  %v1797 = vmul.f32 %v1583, %v153
  %v1798 = vmul.f32 %v1586, %v154
  %v1799 = vmul.f32 %v1591, %v155
  %v1800 = vmul.f32 %v1594, %v156
  %v1801 = vmul.f32 %v1599, %v157
  %v1802 = vmul.f32 %v1602, %v158
  %v1803 = vmul.f32 %v1607, %v159
  %v1804 = vmul.f32 %v1610, %v160
  %v1805 = vmul.f32 %v1615, %v161
  %v1806 = vmul.f32 %v1618, %v162
  %v1807 = vmul.f32 %v1656, %v127
  %v1808 = vmul.f32 %v1659, %v128
  %v1809 = vmul.f32 %v1664, %v129
  %v1810 = vmul.f32 %v1667, %v130
  %v1811 = vmul.f32 %v1672, %v131
  %v1812 = vmul.f32 %v1675, %v132
  %v1813 = vmul.f32 %v1680, %v133
  %v1814 = vmul.f32 %v1683, %v134
  %v1815 = vmul.f32 %v1688, %v135
  %v1816 = vmul.f32 %v1691, %v136
  %v1817 = vmul.f32 %v1696, %v137
  %v1818 = vmul.f32 %v1699, %v138
  %v1819 = vmul.f32 %v1704, %v139
  %v1820 = vmul.f32 %v1707, %v140
  %v1821 = vmul.f32 %v1712, %v141
  %v1822 = vmul.f32 %v1715, %v142
  %v1823 = vmul.f32 %v1720, %v143
  %v1824 = vmul.f32 %v1723, %v144
  %v1825 = vadd.f32 %v1789, %v1807
  %v1826 = vadd.f32 %v1790, %v1808
  %v1827 = vadd.f32 %v1791, %v1809
  %v1828 = vadd.f32 %v1792, %v1810
  %v1829 = vadd.f32 %v1793, %v1811
  %v1830 = vadd.f32 %v1794, %v1812
  %v1831 = vadd.f32 %v1795, %v1813
  %v1832 = vadd.f32 %v1796, %v1814
  %v1833 = vadd.f32 %v1797, %v1815
  %v1834 = vadd.f32 %v1798, %v1816
  %v1835 = vadd.f32 %v1799, %v1817
  %v1836 = vadd.f32 %v1800, %v1818
  %v1837 = vadd.f32 %v1801, %v1819
  %v1838 = vadd.f32 %v1802, %v1820
  %v1839 = vadd.f32 %v1803, %v1821
  %v1840 = vadd.f32 %v1804, %v1822
  %v1841 = vadd.f32 %v1805, %v1823
  %v1842 = vadd.f32 %v1806, %v1824
  %v1843 = vpack.c.bf16 %v1826, %v1825
  %v1844 = vpack.c.bf16 %v1828, %v1827
  %v1845 = vpack.c.bf16 %v1830, %v1829
  %v1846 = vpack.c.bf16 %v1832, %v1831
  %v1847 = vpack.c.bf16 %v1834, %v1833
  %v1848 = vpack.c.bf16 %v1836, %v1835
  %v1849 = vpack.c.bf16 %v1838, %v1837
  %v1850 = vpack.c.bf16 %v1840, %v1839
  %v1851 = vpack.c.bf16 %v1842, %v1841
  %1852 = vmatprep.subr.bf16.mxu0 0
  %1853 = vmatpush1.bf16.msra.mxu0 %v1843
  %1854 = vmatprep.subr.bf16.mxu0 0
  %1855 = vmatpush1.bf16.msra.mxu0 %v1844
  %1856 = vmatprep.subr.bf16.mxu0 0
  %1857 = vmatpush1.bf16.msra.mxu0 %v1845
  %1858 = vmatprep.subr.bf16.mxu0 0
  %1859 = vmatpush1.bf16.msra.mxu0 %v1846
  %1860 = vmatprep.subr.bf16.mxu0 0
  %1861 = vmatpush1.bf16.msra.mxu0 %v1847
  %1862 = vmatprep.subr.bf16.mxu0 0
  %1863 = vmatpush1.bf16.msra.mxu0 %v1848
  %1864 = vmatprep.subr.bf16.mxu0 0
  %1865 = vmatpush1.bf16.msra.mxu0 %v1849
  %1866 = vmatprep.subr.bf16.mxu0 0
  %1867 = vmatpush1.bf16.msra.mxu0 %v1850
  %1868 = vmatprep.subr.bf16.mxu0 0
  %1869 = vmatpush1.bf16.msra.mxu0 %v1851
  %1870 = vmatprep.subr.bf16.mxu0 0
  %1871 = vmatpush1.bf16.msra.mxu0 0
  %1872 = vmatprep.subr.bf16.mxu0 0
  %1873 = vmatpush1.bf16.msra.mxu0 0
  %1874 = vmatprep.subr.bf16.mxu0 0
  %1875 = vmatpush1.bf16.msra.mxu0 0
  %1876 = vmatprep.subr.bf16.mxu0 0
  %1877 = vmatpush1.bf16.msra.mxu0 0
  %1878 = vmatprep.subr.bf16.mxu0 0
  %1879 = vmatpush1.bf16.msra.mxu0 0
  %1880 = vmatprep.subr.bf16.mxu0 0
  %1881 = vmatpush1.bf16.msra.mxu0 0
  %1882 = vmatprep.subr.bf16.mxu0 0
  %1883 = vmatpush1.bf16.msra.mxu0 0
  %1884 = vmatprep.mubr.bf16.mxu0 %v873
  %1885 = vmatmul.mubr.bf16.gmra.mrb[0].mxu0 %v823
  %v1886 = vpop.f32.mrb[0].mxu0
  %v1887 = vadd.f32 0.0, %v1886
  %v1888 = vpop.f32.mrb[0].mxu0
  %v1889 = vpop.f32.mrb[0].mxu0
  %v1890 = vadd.f32 0.0, %v1889
  %v1891 = vpop.f32.mrb[0].mxu0
  %1892 = vmatprep.mubr.bf16.mxu0 %v876
  %1893 = vmatmul.mubr.bf16.gmra.mrb[0].mxu0 %v825
  %v1894 = vpop.f32.mrb[0].mxu0
  %v1895 = vadd.f32 0.0, %v1894
  %v1896 = vpop.f32.mrb[0].mxu0
  %v1897 = vpop.f32.mrb[0].mxu0
  %v1898 = vadd.f32 0.0, %v1897
  %v1899 = vpop.f32.mrb[0].mxu0
  %1900 = vmatprep.mubr.bf16.mxu0 %v879
  %1901 = vmatmul.mubr.bf16.gmra.mrb[0].mxu0 %v827
  %v1902 = vpop.f32.mrb[0].mxu0
  %v1903 = vadd.f32 0.0, %v1902
  %v1904 = vpop.f32.mrb[0].mxu0
  %v1905 = vpop.f32.mrb[0].mxu0
  %v1906 = vadd.f32 0.0, %v1905
  %v1907 = vpop.f32.mrb[0].mxu0
  %1908 = vmatprep.mubr.bf16.mxu0 %v882
  %1909 = vmatmul.mubr.bf16.gmra.mrb[0].mxu0 %v829
  %v1910 = vpop.f32.mrb[0].mxu0
  %v1911 = vadd.f32 0.0, %v1910
  %v1912 = vpop.f32.mrb[0].mxu0
  %v1913 = vpop.f32.mrb[0].mxu0
  %v1914 = vadd.f32 0.0, %v1913
  %v1915 = vpop.f32.mrb[0].mxu0
  %1916 = vmatprep.mubr.bf16.mxu0 %v885
  %1917 = vmatmul.mubr.bf16.gmra.mrb[0].mxu0 %v831
  %v1918 = vpop.f32.mrb[0].mxu0
  %v1919 = vadd.f32 0.0, %v1918
  %v1920 = vpop.f32.mrb[0].mxu0
  %v1921 = vpop.f32.mrb[0].mxu0
  %v1922 = vadd.f32 0.0, %v1921
  %v1923 = vpop.f32.mrb[0].mxu0
  %1924 = vmatprep.mubr.bf16.mxu0 %v888
  %1925 = vmatmul.mubr.bf16.gmra.mrb[0].mxu0 %v833
  %v1926 = vpop.f32.mrb[0].mxu0
  %v1927 = vadd.f32 0.0, %v1926
  %v1928 = vpop.f32.mrb[0].mxu0
  %v1929 = vpop.f32.mrb[0].mxu0
  %v1930 = vadd.f32 0.0, %v1929
  %v1931 = vpop.f32.mrb[0].mxu0
  %1932 = vmatprep.mubr.bf16.mxu0 %v891
  %1933 = vmatmul.mubr.bf16.gmra.mrb[0].mxu0 %v835
  %v1934 = vpop.f32.mrb[0].mxu0
  %v1935 = vadd.f32 0.0, %v1934
  %v1936 = vpop.f32.mrb[0].mxu0
  %v1937 = vpop.f32.mrb[0].mxu0
  %v1938 = vadd.f32 0.0, %v1937
  %v1939 = vpop.f32.mrb[0].mxu0
  %1940 = vmatprep.mubr.bf16.mxu0 %v894
  %1941 = vmatmul.mubr.bf16.gmra.mrb[0].mxu0 %v837
  %v1942 = vpop.f32.mrb[0].mxu0
  %v1943 = vadd.f32 0.0, %v1942
  %v1944 = vpop.f32.mrb[0].mxu0
  %v1945 = vpop.f32.mrb[0].mxu0
  %v1946 = vadd.f32 0.0, %v1945
  %v1947 = vpop.f32.mrb[0].mxu0
  %1948 = vmatprep.mubr.bf16.mxu0 %v897
  %1949 = vmatmul.mubr.bf16.gmra.mrb[0].mxu0 %v839
  %v1950 = vpop.f32.mrb[0].mxu0
  %v1951 = vadd.f32 0.0, %v1950
  %v1952 = vpop.f32.mrb[0].mxu0
  %v1953 = vpop.f32.mrb[0].mxu0
  %v1954 = vadd.f32 0.0, %v1953
  %v1955 = vpop.f32.mrb[0].mxu0
  %1956 = vmatprep.mubr.bf16.mxu0 %v900
  %1957 = vmatmul.mubr.bf16.gmra.mrb[0].mxu0 %v841
  %v1958 = vpop.f32.mrb[0].mxu0
  %v1959 = vadd.f32 0.0, %v1958
  %v1960 = vpop.f32.mrb[0].mxu0
  %v1961 = vpop.f32.mrb[0].mxu0
  %v1962 = vadd.f32 0.0, %v1961
  %v1963 = vpop.f32.mrb[0].mxu0
  %1964 = vmatprep.mubr.bf16.mxu0 %v903
  %1965 = vmatmul.mubr.bf16.gmra.mrb[0].mxu0 %v843
  %v1966 = vpop.f32.mrb[0].mxu0
  %v1967 = vadd.f32 0.0, %v1966
  %v1968 = vpop.f32.mrb[0].mxu0
  %v1969 = vpop.f32.mrb[0].mxu0
  %v1970 = vadd.f32 0.0, %v1969
  %v1971 = vpop.f32.mrb[0].mxu0
  %1972 = vmatprep.mubr.bf16.mxu0 %v906
  %1973 = vmatmul.mubr.bf16.gmra.mrb[0].mxu0 %v845
  %v1974 = vpop.f32.mrb[0].mxu0
  %v1975 = vadd.f32 0.0, %v1974
  %v1976 = vpop.f32.mrb[0].mxu0
  %v1977 = vpop.f32.mrb[0].mxu0
  %v1978 = vadd.f32 0.0, %v1977
  %v1979 = vpop.f32.mrb[0].mxu0
  %1980 = vmatprep.mubr.bf16.mxu0 %v909
  %1981 = vmatmul.mubr.bf16.gmra.mrb[0].mxu0 %v847
  %v1982 = vpop.f32.mrb[0].mxu0
  %v1983 = vadd.f32 0.0, %v1982
  %v1984 = vpop.f32.mrb[0].mxu0
  %v1985 = vpop.f32.mrb[0].mxu0
  %v1986 = vadd.f32 0.0, %v1985
  %v1987 = vpop.f32.mrb[0].mxu0
  %1988 = vmatprep.mubr.bf16.mxu0 %v912
  %1989 = vmatmul.mubr.bf16.gmra.mrb[0].mxu0 %v849
  %v1990 = vpop.f32.mrb[0].mxu0
  %v1991 = vadd.f32 0.0, %v1990
  %v1992 = vpop.f32.mrb[0].mxu0
  %v1993 = vpop.f32.mrb[0].mxu0
  %v1994 = vadd.f32 0.0, %v1993
  %v1995 = vpop.f32.mrb[0].mxu0
  %1996 = vmatprep.mubr.bf16.mxu0 %v915
  %1997 = vmatmul.mubr.bf16.gmra.mrb[0].mxu0 %v851
  %v1998 = vpop.f32.mrb[0].mxu0
  %v1999 = vadd.f32 0.0, %v1998
  %v2000 = vpop.f32.mrb[0].mxu0
  %v2001 = vpop.f32.mrb[0].mxu0
  %v2002 = vadd.f32 0.0, %v2001
  %v2003 = vpop.f32.mrb[0].mxu0
  %2004 = vmatprep.mubr.bf16.mxu0 %v918
  %2005 = vmatmul.mubr.bf16.gmra.mrb[0].mxu0 %v853
  %v2006 = vpop.f32.mrb[0].mxu0
  %v2007 = vadd.f32 0.0, %v2006
  %v2008 = vpop.f32.mrb[0].mxu0
  %v2009 = vpop.f32.mrb[0].mxu0
  %v2010 = vadd.f32 0.0, %v2009
  %v2011 = vpop.f32.mrb[0].mxu0
  %2012 = vdwg.mxu0
  %2013 = vmatprep.subr.bf16.mxu0 0
  %2014 = vmatpush1.bf16.msra.mxu0 %v1780
  %2015 = vmatprep.subr.bf16.mxu0 0
  %2016 = vmatpush1.bf16.msra.mxu0 %v1781
  %2017 = vmatprep.subr.bf16.mxu0 0
  %2018 = vmatpush1.bf16.msra.mxu0 %v1782
  %2019 = vmatprep.subr.bf16.mxu0 0
  %2020 = vmatpush1.bf16.msra.mxu0 %v1783
  %2021 = vmatprep.subr.bf16.mxu0 0
  %2022 = vmatpush1.bf16.msra.mxu0 %v1784
  %2023 = vmatprep.subr.bf16.mxu0 0
  %2024 = vmatpush1.bf16.msra.mxu0 %v1785
  %2025 = vmatprep.subr.bf16.mxu0 0
  %2026 = vmatpush1.bf16.msra.mxu0 %v1786
  %2027 = vmatprep.subr.bf16.mxu0 0
  %2028 = vmatpush1.bf16.msra.mxu0 %v1787
  %2029 = vmatprep.subr.bf16.mxu0 0
  %2030 = vmatpush1.bf16.msra.mxu0 %v1788
  %2031 = vmatprep.subr.bf16.mxu0 0
  %2032 = vmatpush1.bf16.msra.mxu0 0
  %2033 = vmatprep.subr.bf16.mxu0 0
  %2034 = vmatpush1.bf16.msra.mxu0 0
  %2035 = vmatprep.subr.bf16.mxu0 0
  %2036 = vmatpush1.bf16.msra.mxu0 0
  %2037 = vmatprep.subr.bf16.mxu0 0
  %2038 = vmatpush1.bf16.msra.mxu0 0
  %2039 = vmatprep.subr.bf16.mxu0 0
  %2040 = vmatpush1.bf16.msra.mxu0 0
  %2041 = vmatprep.subr.bf16.mxu0 0
  %2042 = vmatpush1.bf16.msra.mxu0 0
  %2043 = vmatprep.subr.bf16.mxu0 0
  %2044 = vmatpush1.bf16.msra.mxu0 0
  %2045 = vmatprep.mubr.bf16.mxu0 %v1226
  %2046 = vmatmul.mubr.bf16.gmra.mrb[0].mxu0 %v1177
  %v2047 = vpop.f32.mrb[0].mxu0
  %v2048 = vadd.f32 %v1887, %v2047
  %v2049 = vpop.f32.mrb[0].mxu0
  %v2050 = vpop.f32.mrb[0].mxu0
  %v2051 = vadd.f32 %v1890, %v2050
  %v2052 = vpop.f32.mrb[0].mxu0
  %2053 = vmatprep.mubr.bf16.mxu0 %v1229
  %2054 = vmatmul.mubr.bf16.gmra.mrb[0].mxu0 %v1179
  %v2055 = vpop.f32.mrb[0].mxu0
  %v2056 = vadd.f32 %v1895, %v2055
  %v2057 = vpop.f32.mrb[0].mxu0
  %v2058 = vpop.f32.mrb[0].mxu0
  %v2059 = vadd.f32 %v1898, %v2058
  %v2060 = vpop.f32.mrb[0].mxu0
  %2061 = vmatprep.mubr.bf16.mxu0 %v1232
  %2062 = vmatmul.mubr.bf16.gmra.mrb[0].mxu0 %v1181
  %v2063 = vpop.f32.mrb[0].mxu0
  %v2064 = vadd.f32 %v1903, %v2063
  %v2065 = vpop.f32.mrb[0].mxu0
  %v2066 = vpop.f32.mrb[0].mxu0
  %v2067 = vadd.f32 %v1906, %v2066
  %v2068 = vpop.f32.mrb[0].mxu0
  %2069 = vmatprep.mubr.bf16.mxu0 %v1235
  %2070 = vmatmul.mubr.bf16.gmra.mrb[0].mxu0 %v1183
  %v2071 = vpop.f32.mrb[0].mxu0
  %v2072 = vadd.f32 %v1911, %v2071
  %v2073 = vpop.f32.mrb[0].mxu0
  %v2074 = vpop.f32.mrb[0].mxu0
  %v2075 = vadd.f32 %v1914, %v2074
  %v2076 = vpop.f32.mrb[0].mxu0
  %2077 = vmatprep.mubr.bf16.mxu0 %v1238
  %2078 = vmatmul.mubr.bf16.gmra.mrb[0].mxu0 %v1185
  %v2079 = vpop.f32.mrb[0].mxu0
  %v2080 = vadd.f32 %v1919, %v2079
  %v2081 = vpop.f32.mrb[0].mxu0
  %v2082 = vpop.f32.mrb[0].mxu0
  %v2083 = vadd.f32 %v1922, %v2082
  %v2084 = vpop.f32.mrb[0].mxu0
  %2085 = vmatprep.mubr.bf16.mxu0 %v1241
  %2086 = vmatmul.mubr.bf16.gmra.mrb[0].mxu0 %v1187
  %v2087 = vpop.f32.mrb[0].mxu0
  %v2088 = vadd.f32 %v1927, %v2087
  %v2089 = vpop.f32.mrb[0].mxu0
  %v2090 = vpop.f32.mrb[0].mxu0
  %v2091 = vadd.f32 %v1930, %v2090
  %v2092 = vpop.f32.mrb[0].mxu0
  %2093 = vmatprep.mubr.bf16.mxu0 %v1244
  %2094 = vmatmul.mubr.bf16.gmra.mrb[0].mxu0 %v1189
  %v2095 = vpop.f32.mrb[0].mxu0
  %v2096 = vadd.f32 %v1935, %v2095
  %v2097 = vpop.f32.mrb[0].mxu0
  %v2098 = vpop.f32.mrb[0].mxu0
  %v2099 = vadd.f32 %v1938, %v2098
  %v2100 = vpop.f32.mrb[0].mxu0
  %2101 = vmatprep.mubr.bf16.mxu0 %v1247
  %2102 = vmatmul.mubr.bf16.gmra.mrb[0].mxu0 %v1191
  %v2103 = vpop.f32.mrb[0].mxu0
  %v2104 = vadd.f32 %v1943, %v2103
  %v2105 = vpop.f32.mrb[0].mxu0
  %v2106 = vpop.f32.mrb[0].mxu0
  %v2107 = vadd.f32 %v1946, %v2106
  %v2108 = vpop.f32.mrb[0].mxu0
  %2109 = vmatprep.mubr.bf16.mxu0 %v1250
  %2110 = vmatmul.mubr.bf16.gmra.mrb[0].mxu0 %v1193
  %v2111 = vpop.f32.mrb[0].mxu0
  %v2112 = vadd.f32 %v1951, %v2111
  %v2113 = vpop.f32.mrb[0].mxu0
  %v2114 = vpop.f32.mrb[0].mxu0
  %v2115 = vadd.f32 %v1954, %v2114
  %v2116 = vpop.f32.mrb[0].mxu0
  %2117 = vmatprep.mubr.bf16.mxu0 %v1253
  %2118 = vmatmul.mubr.bf16.gmra.mrb[0].mxu0 %v1195
  %v2119 = vpop.f32.mrb[0].mxu0
  %v2120 = vadd.f32 %v1959, %v2119
  %v2121 = vpop.f32.mrb[0].mxu0
  %v2122 = vpop.f32.mrb[0].mxu0
  %v2123 = vadd.f32 %v1962, %v2122
  %v2124 = vpop.f32.mrb[0].mxu0
  %2125 = vmatprep.mubr.bf16.mxu0 %v1256
  %2126 = vmatmul.mubr.bf16.gmra.mrb[0].mxu0 %v1197
  %v2127 = vpop.f32.mrb[0].mxu0
  %v2128 = vadd.f32 %v1967, %v2127
  %v2129 = vpop.f32.mrb[0].mxu0
  %v2130 = vpop.f32.mrb[0].mxu0
  %v2131 = vadd.f32 %v1970, %v2130
  %v2132 = vpop.f32.mrb[0].mxu0
  %2133 = vmatprep.mubr.bf16.mxu0 %v1259
  %2134 = vmatmul.mubr.bf16.gmra.mrb[0].mxu0 %v1199
  %v2135 = vpop.f32.mrb[0].mxu0
  %v2136 = vadd.f32 %v1975, %v2135
  %v2137 = vpop.f32.mrb[0].mxu0
  %v2138 = vpop.f32.mrb[0].mxu0
  %v2139 = vadd.f32 %v1978, %v2138
  %v2140 = vpop.f32.mrb[0].mxu0
  %2141 = vmatprep.mubr.bf16.mxu0 %v1262
  %2142 = vmatmul.mubr.bf16.gmra.mrb[0].mxu0 %v1201
  %v2143 = vpop.f32.mrb[0].mxu0
  %v2144 = vadd.f32 %v1983, %v2143
  %v2145 = vpop.f32.mrb[0].mxu0
  %v2146 = vpop.f32.mrb[0].mxu0
  %v2147 = vadd.f32 %v1986, %v2146
  %v2148 = vpop.f32.mrb[0].mxu0
  %2149 = vmatprep.mubr.bf16.mxu0 %v1265
  %2150 = vmatmul.mubr.bf16.gmra.mrb[0].mxu0 %v1203
  %v2151 = vpop.f32.mrb[0].mxu0
  %v2152 = vadd.f32 %v1991, %v2151
  %v2153 = vpop.f32.mrb[0].mxu0
  %v2154 = vpop.f32.mrb[0].mxu0
  %v2155 = vadd.f32 %v1994, %v2154
  %v2156 = vpop.f32.mrb[0].mxu0
  %2157 = vmatprep.mubr.bf16.mxu0 %v1268
  %2158 = vmatmul.mubr.bf16.gmra.mrb[0].mxu0 %v1205
  %v2159 = vpop.f32.mrb[0].mxu0
  %v2160 = vadd.f32 %v1999, %v2159
  %v2161 = vpop.f32.mrb[0].mxu0
  %v2162 = vpop.f32.mrb[0].mxu0
  %v2163 = vadd.f32 %v2002, %v2162
  %v2164 = vpop.f32.mrb[0].mxu0
  %2165 = vmatprep.mubr.bf16.mxu0 %v1271
  %2166 = vmatmul.mubr.bf16.gmra.mrb[0].mxu0 %v1207
  %v2167 = vpop.f32.mrb[0].mxu0
  %v2168 = vadd.f32 %v2007, %v2167
  %v2169 = vpop.f32.mrb[0].mxu0
  %v2170 = vpop.f32.mrb[0].mxu0
  %v2171 = vadd.f32 %v2010, %v2170
  %v2172 = vpop.f32.mrb[0].mxu0
  %2173 = vdwg.mxu0
  %s2174 = scalar_lea.vmem %s7, 256
  %2175 = vst.msk [vmem:[%s2174] sm:$0xff] %vm1434, %v2048
  %2176 = vst.msk [vmem:[%s2174 + $0x8] sm:$0xff] %vm1434, %v2051
  %2177 = vst.msk [vmem:[%s2174 + $0x10] sm:$0xff] %vm1434, %v2056
  %2178 = vst.msk [vmem:[%s2174 + $0x18] sm:$0xff] %vm1434, %v2059
  %2179 = vst.msk [vmem:[%s2174 + $0x20] sm:$0xff] %vm1434, %v2064
  %2180 = vst.msk [vmem:[%s2174 + $0x28] sm:$0xff] %vm1434, %v2067
  %2181 = vst.msk [vmem:[%s2174 + $0x30] sm:$0xff] %vm1434, %v2072
  %2182 = vst.msk [vmem:[%s2174 + $0x38] sm:$0xff] %vm1434, %v2075
  %2183 = vst.msk [vmem:[%s2174 + $0x40] sm:$0xff] %vm1434, %v2080
  %2184 = vst.msk [vmem:[%s2174 + $0x48] sm:$0xff] %vm1434, %v2083
  %2185 = vst.msk [vmem:[%s2174 + $0x50] sm:$0xff] %vm1434, %v2088
  %2186 = vst.msk [vmem:[%s2174 + $0x58] sm:$0xff] %vm1434, %v2091
  %2187 = vst.msk [vmem:[%s2174 + $0x60] sm:$0xff] %vm1434, %v2096
  %2188 = vst.msk [vmem:[%s2174 + $0x68] sm:$0xff] %vm1434, %v2099
  %2189 = vst.msk [vmem:[%s2174 + $0x70] sm:$0xff] %vm1434, %v2104
  %2190 = vst.msk [vmem:[%s2174 + $0x78] sm:$0xff] %vm1434, %v2107
  %2191 = vst.msk [vmem:[%s2174 + $0x80] sm:$0xff] %vm1434, %v2112
  %2192 = vst.msk [vmem:[%s2174 + $0x88] sm:$0xff] %vm1434, %v2115
  %2193 = vst.msk [vmem:[%s2174 + $0x90] sm:$0xff] %vm1434, %v2120
  %2194 = vst.msk [vmem:[%s2174 + $0x98] sm:$0xff] %vm1434, %v2123
  %2195 = vst.msk [vmem:[%s2174 + $0xa0] sm:$0xff] %vm1434, %v2128
  %2196 = vst.msk [vmem:[%s2174 + $0xa8] sm:$0xff] %vm1434, %v2131
  %2197 = vst.msk [vmem:[%s2174 + $0xb0] sm:$0xff] %vm1434, %v2136
  %2198 = vst.msk [vmem:[%s2174 + $0xb8] sm:$0xff] %vm1434, %v2139
  %2199 = vst.msk [vmem:[%s2174 + $0xc0] sm:$0xff] %vm1434, %v2144
  %2200 = vst.msk [vmem:[%s2174 + $0xc8] sm:$0xff] %vm1434, %v2147
  %2201 = vst.msk [vmem:[%s2174 + $0xd0] sm:$0xff] %vm1434, %v2152
  %2202 = vst.msk [vmem:[%s2174 + $0xd8] sm:$0xff] %vm1434, %v2155
  %2203 = vst.msk [vmem:[%s2174 + $0xe0] sm:$0xff] %vm1434, %v2160
  %2204 = vst.msk [vmem:[%s2174 + $0xe8] sm:$0xff] %vm1434, %v2163
  %2205 = vst.msk [vmem:[%s2174 + $0xf0] sm:$0xff] %vm1434, %v2168
  %2206 = vst.msk [vmem:[%s2174 + $0xf8] sm:$0xff] %vm1434, %v2171
  // Predicated region
  $region30: #{tpu_custom_call.1} parent=0 // pred_check
    _
  $region31: #{tpu_custom_call.1} parent=0 // pred_check_branch
    %2208 = sbr.rel (0) target = $region33
  $region32: #{tpu_custom_call.1} parent=0 // pred_region
    _
  $region33: #{tpu_custom_call.1} parent=0 // pred_fallthru
    _
  // Predicated region
  $region34: #{tpu_custom_call.1} parent=0 // pred_check
    _
  $region35: #{tpu_custom_call.1} parent=0 // pred_check_branch
    %2210 = sbr.rel (0) target = $region37
  $region36: #{tpu_custom_call.1} parent=0 // pred_region
    _
  $region37: #{tpu_custom_call.1} parent=0 // pred_fallthru
    _

</llo_original>
